<compile_context>
chip_gen: v5e
topology: v5e:2x2
jax: 0.10.0
libtpu: 0.0.40
codegen_flags: <defaults>
</compile_context>

<pallas_src>
import functools
import math

import jax
import jax.numpy as jnp
from jax.experimental import pallas as pl
from jax.experimental.pallas import tpu as pltpu


# --------------------------------------------------------------------------
# helpers
# --------------------------------------------------------------------------
def _layernorm(x, eps=1e-6):
    # nn.LayerNorm(..., elementwise_affine=False, eps=1e-6): biased variance.
    mu = jnp.mean(x, axis=-1, keepdims=True)
    var = jnp.mean((x - mu) ** 2, axis=-1, keepdims=True)
    return (x - mu) * jax.lax.rsqrt(var + eps)


def _const_spec(shape, index_map):
    """BlockSpec for a grid-invariant block (weights / biases).

    pipeline_mode=pl.Buffered(1): the index_map never changes across the grid,
    so a single VMEM buffer suffices -- halves resident weight VMEM.  Falls
    back to the default (double-buffered) spec if this jax version does not
    support the kwarg.
    """
    try:
        return pl.BlockSpec(shape, index_map, pipeline_mode=pl.Buffered(1))
    except Exception:
        return pl.BlockSpec(shape, index_map)


def _vmem_limit_bytes(fraction=0.75, fallback=48 * 1024 * 1024):
    """Per-generation scoped-VMEM budget (not 100% of physical).

    ~48 MiB on v7x (64 MiB physical), ~96 MiB on v5e/v6e (128 MiB physical),
    leaving headroom for compiler-internal scratch and output pipelining.
    """
    try:
        return int(pltpu.get_tpu_info().vmem_capacity_bytes * fraction)
    except Exception:
        return fallback


# --------------------------------------------------------------------------
# pass 1: LN1 + adaLN modulate + fused QKV projection (per token tile)
# --------------------------------------------------------------------------
def qkv_kernel(x_ref, mods_ref, w_qkv_ref, b_qkv_ref,
               q_ref, k_ref, v_ref, *, num_heads):
    D = x_ref.shape[2]
    Dh = D // num_heads
    cdt = w_qkv_ref.dtype                       # bf16 MXU operand dtype

    x = x_ref[0]                                # [Tn, D] f32
    mods = mods_ref[0]                          # [6, D]  f32
    shift_msa = mods[0:1, :]
    scale_msa = mods[1:2, :]

    xm = _layernorm(x) * (1.0 + scale_msa) + shift_msa
    qkv = jnp.dot(xm.astype(cdt), w_qkv_ref[...],
                  preferred_element_type=jnp.float32) + b_qkv_ref[...]

    # Fold 1/sqrt(Dh) into q here (O(N*D)) instead of scaling [H,N,N] scores.
    attn_scale = 1.0 / math.sqrt(Dh)
    q_ref[0] = (qkv[:, 0 * D:1 * D] * attn_scale).astype(q_ref.dtype)
    k_ref[0] = qkv[:, 1 * D:2 * D].astype(k_ref.dtype)
    v_ref[0] = qkv[:, 2 * D:3 * D].astype(v_ref.dtype)


# --------------------------------------------------------------------------
# pass 2: flash attention over KV tiles + DiT epilogue (per query tile)
# --------------------------------------------------------------------------
def flash_block_kernel(x_ref, mods_ref, q_ref, kt_ref, v_ref,
                       w_proj_ref, b_proj_ref,
                       w_fc1_ref, b_fc1_ref,
                       w_fc2_ref, b_fc2_ref,
                       o_ref,
                       m_sc, l_sc, acc_sc, *, num_heads):
    ki = pl.program_id(2)
    cdt = w_proj_ref.dtype                      # bf16

    @pl.when(ki == 0)
    def _init():
        m_sc[...] = jnp.full(m_sc.shape, -jnp.inf, jnp.float32)
        l_sc[...] = jnp.zeros(l_sc.shape, jnp.float32)
        acc_sc[...] = jnp.zeros(acc_sc.shape, jnp.float32)

    q = q_ref[0]                                # [H, Tq, Dh] bf16 (pre-scaled)
    kt = kt_ref[0]                              # [H, Dh, Tk] bf16 (K pre-transposed)
    v = v_ref[0]                                # [H, Tk, Dh] bf16

    # Scores for this KV tile: canonical (M,K)x(K,N) batched MXU matmul.
    s = jnp.einsum('hqd,hdk->hqk', q, kt,
                   preferred_element_type=jnp.float32)        # [H, Tq, Tk] f32

    m_prev = m_sc[...]
    m_new = jnp.maximum(m_prev, jnp.max(s, axis=-1, keepdims=True))
    alpha = jnp.exp(m_prev - m_new)
    p = jnp.exp(s - m_new)                      # unnormalized (deferred softmax)
    l_sc[...] = alpha * l_sc[...] + jnp.sum(p, axis=-1, keepdims=True)
    acc_sc[...] = alpha * acc_sc[...] + jnp.einsum(
        'hqk,hkd->hqd', p.astype(cdt), v, preferred_element_type=jnp.float32)
    m_sc[...] = m_new

    @pl.when(ki == pl.num_programs(2) - 1)
    def _epilogue():
        x = x_ref[0]                            # [Tq, D] f32 residual stream
        mods = mods_ref[0]                      # [6, D]  f32
        gate_msa = mods[2:3, :]
        shift_mlp = mods[3:4, :]
        scale_mlp = mods[4:5, :]
        gate_mlp = mods[5:6, :]

        # Deferred normalization: one O(H*Tq*Dh) scale instead of O(H*Tq*N).
        ctx = acc_sc[...] * pl.reciprocal(l_sc[...], approx=True)

        # Head merge happens once per query tile (amortized over the KV loop).
        attn = jnp.concatenate([ctx[h] for h in range(num_heads)], axis=-1)
        attn = jnp.dot(attn.astype(cdt), w_proj_ref[...],
                       preferred_element_type=jnp.float32) + b_proj_ref[...]
        x1 = x + gate_msa * attn

        xm2 = _layernorm(x1) * (1.0 + scale_mlp) + shift_mlp
        h1 = jnp.dot(xm2.astype(cdt), w_fc1_ref[...],
                     preferred_element_type=jnp.float32) + b_fc1_ref[...]
        h1 = jax.nn.gelu(h1, approximate=True)  # matches nn.GELU('tanh')
        h2 = jnp.dot(h1.astype(cdt), w_fc2_ref[...],
                     preferred_element_type=jnp.float32) + b_fc2_ref[...]
        o_ref[0] = (x1 + gate_mlp * h2).astype(o_ref.dtype)   # lane-dense store


# --------------------------------------------------------------------------
# wrapper
# --------------------------------------------------------------------------
def dit_block(x, c, params, num_heads, *, tq=None, tk=None, tn=None,
              compute_dtype=jnp.bfloat16):
    """adaLN-Zero DiTBlock forward.  x: [B, N, D] f32, c: [B, D] f32."""
    B, N, D = x.shape
    H = num_heads
    assert D % H == 0, "hidden_size must be divisible by num_heads"
    Dh = D // H
    Dm = params["w_fc1"].shape[0]
    f32 = jnp.float32

    tn = tn or min(N, 256)
    tq = tq or min(N, 128)
    tk = tk or min(N, 128)
    assert N % tn == 0 and N % tq == 0 and N % tk == 0

    # adaLN-Zero path hoisted out of the kernels (tiny [B,D]x[D,6D] GEMM);
    # the six modulation rows are packed into one [B, 6, D] input.
    ada = jax.nn.silu(c) @ params["w_ada"].T + params["b_ada"]
    mods = ada.reshape(B, 6, D)
    # rows: shift_msa, scale_msa, gate_msa, shift_mlp, scale_mlp, gate_mlp

    # Weights pre-transposed to [in, out] and cast to bf16 (f32 accumulation).
    # TODO(synk): on v7x the big GEMM weights could drop to fp8 (~2x MXU/VMEM).
    w_qkv = params["w_qkv"].T.astype(compute_dtype)     # [D, 3D]
    b_qkv = params["b_qkv"].reshape(1, 3 * D).astype(f32)
    w_proj = params["w_proj"].T.astype(compute_dtype)   # [D, D]
    b_proj = params["b_proj"].reshape(1, D).astype(f32)
    w_fc1 = params["w_fc1"].T.astype(compute_dtype)     # [D, Dm]
    b_fc1 = params["b_fc1"].reshape(1, Dm).astype(f32)
    w_fc2 = params["w_fc2"].T.astype(compute_dtype)     # [Dm, D]
    b_fc2 = params["b_fc2"].reshape(1, D).astype(f32)

    vlim = _vmem_limit_bytes()

    # ---- pass 1: LN1 + modulate + QKV projection --------------------------
    qkv_fn = pl.pallas_call(
        functools.partial(qkv_kernel, num_heads=H),
        out_shape=(jax.ShapeDtypeStruct((B, N, D), compute_dtype),) * 3,
        grid=(B, N // tn),
        in_specs=[
            pl.BlockSpec((1, tn, D), lambda b, t: (b, t, 0)),
            pl.BlockSpec((1, 6, D), lambda b, t: (b, 0, 0)),
            _const_spec((D, 3 * D), lambda b, t: (0, 0)),
            _const_spec((1, 3 * D), lambda b, t: (0, 0)),
        ],
        out_specs=[pl.BlockSpec((1, tn, D), lambda b, t: (b, t, 0))] * 3,
        compiler_params=pltpu.CompilerParams(
            dimension_semantics=("parallel", "parallel"),
            vmem_limit_bytes=vlim),
    )
    q, k, v = qkv_fn(x, mods, w_qkv, b_qkv)

    # Head-major relayout once, in the wrapper (layout plumbing): no per-step
    # stack/concat head splits inside the attention kernel, and K is handed
    # over pre-transposed so both attention matmuls are canonical (M,K)x(K,N).
    qh = q.reshape(B, N, H, Dh).transpose(0, 2, 1, 3)    # [B, H, N, Dh]
    kt = k.reshape(B, N, H, Dh).transpose(0, 2, 3, 1)    # [B, H, Dh, N]
    vh = v.reshape(B, N, H, Dh).transpose(0, 2, 1, 3)    # [B, H, N, Dh]

    # ---- pass 2: flash attention + DiT epilogue ----------------------------
    flash_fn = pl.pallas_call(
        functools.partial(flash_block_kernel, num_heads=H),
        out_shape=jax.ShapeDtypeStruct((B, N, D), x.dtype),
        grid=(B, N // tq, N // tk),
        in_specs=[
            pl.BlockSpec((1, tq, D), lambda b, qi, ki: (b, qi, 0)),        # x
            pl.BlockSpec((1, 6, D), lambda b, qi, ki: (b, 0, 0)),          # mods
            pl.BlockSpec((1, H, tq, Dh), lambda b, qi, ki: (b, 0, qi, 0)),  # q
            pl.BlockSpec((1, H, Dh, tk), lambda b, qi, ki: (b, 0, 0, ki)),  # k^T
            pl.BlockSpec((1, H, tk, Dh), lambda b, qi, ki: (b, 0, ki, 0)),  # v
            _const_spec((D, D), lambda b, qi, ki: (0, 0)),                 # w_proj
            _const_spec((1, D), lambda b, qi, ki: (0, 0)),                 # b_proj
            _const_spec((D, Dm), lambda b, qi, ki: (0, 0)),                # w_fc1
            _const_spec((1, Dm), lambda b, qi, ki: (0, 0)),                # b_fc1
            _const_spec((Dm, D), lambda b, qi, ki: (0, 0)),                # w_fc2
            _const_spec((1, D), lambda b, qi, ki: (0, 0)),                 # b_fc2
        ],
        out_specs=pl.BlockSpec((1, tq, D), lambda b, qi, ki: (b, qi, 0)),
        scratch_shapes=[
            pltpu.VMEM((H, tq, 1), jnp.float32),     # running max
            pltpu.VMEM((H, tq, 1), jnp.float32),     # running sum
            pltpu.VMEM((H, tq, Dh), jnp.float32),    # unnormalized PV accum
        ],
        compiler_params=pltpu.CompilerParams(
            dimension_semantics=("parallel", "parallel", "arbitrary"),
            vmem_limit_bytes=vlim),
    )
    return flash_fn(x, mods, qh, kt, vh,
                    w_proj, b_proj, w_fc1, b_fc1, w_fc2, b_fc2)


# --------------------------------------------------------------------------
# pure-f32 reference (mirrors the PyTorch DiTBlock forward exactly)
# --------------------------------------------------------------------------
def dit_block_ref_f32(x, c, params, num_heads):
    B, N, D = x.shape
    H = num_heads
    Dh = D // H

    def ln(t):
        mu = t.mean(-1, keepdims=True)
        var = ((t - mu) ** 2).mean(-1, keepdims=True)
        return (t - mu) / jnp.sqrt(var + 1e-6)

    def mod(t, sh, sc):
        return t * (1.0 + sc[:, None, :]) + sh[:, None, :]

    ada = jax.nn.silu(c) @ params["w_ada"].T + params["b_ada"]
    shift_msa, scale_msa, gate_msa, shift_mlp, scale_mlp, gate_mlp = \
        jnp.split(ada, 6, axis=-1)

    xm = mod(ln(x), shift_msa, scale_msa)
    qkv = xm @ params["w_qkv"].T + params["b_qkv"]
    qkv = jnp.transpose(qkv.reshape(B, N, 3, H, Dh), (2, 0, 3, 1, 4))
    q, k, v = qkv[0], qkv[1], qkv[2]                                   # [B,H,N,Dh]
    attn = jax.nn.softmax((q @ jnp.swapaxes(k, -1, -2)) / math.sqrt(Dh), axis=-1)
    ao = jnp.transpose(attn @ v, (0, 2, 1, 3)).reshape(B, N, D)
    ao = ao @ params["w_proj"].T + params["b_proj"]
    x = x + gate_msa[:, None, :] * ao

    xm2 = mod(ln(x), shift_mlp, scale_mlp)
    h = jax.nn.gelu(xm2 @ params["w_fc1"].T + params["b_fc1"], approximate=True)
    h = h @ params["w_fc2"].T + params["b_fc2"]
    x = x + gate_mlp[:, None, :] * h
    return x


# --------------------------------------------------------------------------
# mixed-precision reference (mirrors the kernel's bf16/f32 cast points)
# --------------------------------------------------------------------------
def dit_block_ref_mixed(x, c, params, num_heads, compute_dtype=jnp.bfloat16):
    B, N, D = x.shape
    H = num_heads
    Dh = D // H
    f32 = jnp.float32

    def ln(t):
        mu = t.mean(-1, keepdims=True)
        var = ((t - mu) ** 2).mean(-1, keepdims=True)
        return (t - mu) * jax.lax.rsqrt(var + 1e-6)

    ada = jax.nn.silu(c) @ params["w_ada"].T + params["b_ada"]
    shift_msa, scale_msa, gate_msa, shift_mlp, scale_mlp, gate_mlp = \
        (m[:, None, :] for m in jnp.split(ada, 6, axis=-1))

    w_qkv = params["w_qkv"].T.astype(compute_dtype)
    w_proj = params["w_proj"].T.astype(compute_dtype)
    w_fc1 = params["w_fc1"].T.astype(compute_dtype)
    w_fc2 = params["w_fc2"].T.astype(compute_dtype)

    xm = ln(x) * (1.0 + scale_msa) + shift_msa
    qkv = jnp.einsum('bnd,de->bne', xm.astype(compute_dtype), w_qkv,
                     preferred_element_type=f32) + params["b_qkv"]
    attn_scale = 1.0 / math.sqrt(Dh)
    q = (qkv[..., 0 * D:1 * D] * attn_scale).astype(compute_dtype)
    k = qkv[..., 1 * D:2 * D].astype(compute_dtype)
    v = qkv[..., 2 * D:3 * D].astype(compute_dtype)

    def heads(t):
        return jnp.transpose(t.reshape(B, N, H, Dh), (0, 2, 1, 3))

    q, k, v = heads(q), heads(k), heads(v)
    s = jnp.einsum('bhqd,bhkd->bhqk', q, k, preferred_element_type=f32)
    p = jax.nn.softmax(s, axis=-1)
    ctx = jnp.einsum('bhqk,bhkd->bhqd', p.astype(compute_dtype), v,
                     preferred_element_type=f32)
    ao = jnp.transpose(ctx, (0, 2, 1, 3)).reshape(B, N, D)
    ao = jnp.einsum('bnd,de->bne', ao.astype(compute_dtype), w_proj,
                    preferred_element_type=f32) + params["b_proj"]
    x = x + gate_msa * ao

    xm2 = ln(x) * (1.0 + scale_mlp) + shift_mlp
    h1 = jnp.einsum('bnd,dm->bnm', xm2.astype(compute_dtype), w_fc1,
                    preferred_element_type=f32) + params["b_fc1"]
    h1 = jax.nn.gelu(h1, approximate=True)
    h2 = jnp.einsum('bnm,md->bnd', h1.astype(compute_dtype), w_fc2,
                    preferred_element_type=f32) + params["b_fc2"]
    return x + gate_mlp * h2


if __name__ == "__main__":
    # Small shapes consistent with DiTCloud defaults (hidden_size=256,
    # num_heads=16, mlp_ratio=4.0); N chosen so the flash grid has multiple
    # query tiles (4) and multiple KV steps (2), exercising the online softmax.
    B, N, D, H = 2, 256, 256, 16
    Dm = int(D * 4.0)
    TQ, TK, TN = 64, 128, 128

    key = jax.random.PRNGKey(0)
    keys = jax.random.split(key, 12)
    x = jax.random.normal(keys[0], (B, N, D), jnp.float32)
    c = jax.random.normal(keys[1], (B, D), jnp.float32)

    s = 0.05
    params = {
        "w_ada": s * jax.random.normal(keys[2], (6 * D, D), jnp.float32),
        "b_ada": s * jax.random.normal(keys[3], (1, 6 * D), jnp.float32),
        "w_qkv": s * jax.random.normal(keys[4], (3 * D, D), jnp.float32),
        "b_qkv": s * jax.random.normal(keys[5], (1, 3 * D), jnp.float32),
        "w_proj": s * jax.random.normal(keys[6], (D, D), jnp.float32),
        "b_proj": s * jax.random.normal(keys[7], (1, D), jnp.float32),
        "w_fc1": s * jax.random.normal(keys[8], (Dm, D), jnp.float32),
        "b_fc1": s * jax.random.normal(keys[9], (1, Dm), jnp.float32),
        "w_fc2": s * jax.random.normal(keys[10], (D, Dm), jnp.float32),
        "b_fc2": s * jax.random.normal(keys[11], (1, D), jnp.float32),
    }

    out = dit_block(x, c, params, H, tq=TQ, tk=TK, tn=TN)
    jax.block_until_ready(out)
    assert out.shape == (B, N, D)

    ref_mixed = dit_block_ref_mixed(x, c, params, H)
    ref_f32 = dit_block_ref_f32(x, c, params, H)
    err_mixed = float(jnp.max(jnp.abs(out - ref_mixed)))
    err_f32 = float(jnp.max(jnp.abs(out - ref_f32)))
    assert jnp.allclose(out, ref_mixed, atol=2e-2, rtol=2e-2), \
        f"mixed-precision reference mismatch: max abs err {err_mixed}"
    assert jnp.allclose(out, ref_f32, atol=6e-2, rtol=6e-2), \
        f"f32 reference mismatch: max abs err {err_f32}"
    print("KERNEL_OK")
</pallas_src>

<mosaic_0001>
module attributes {stable_mosaic.version = 11 : i64} {
  func.func @qkv_kernel(%arg0: i32, %arg1: i32, %arg2: memref<1x128x256xf32, #tpu.memory_space<vmem>>, %arg3: memref<1x6x256xf32, #tpu.memory_space<vmem>>, %arg4: memref<256x768xbf16, #tpu.memory_space<vmem>>, %arg5: memref<1x768xf32, #tpu.memory_space<vmem>>, %arg6: memref<1x128x256xbf16, #tpu.memory_space<vmem>>, %arg7: memref<1x128x256xbf16, #tpu.memory_space<vmem>>, %arg8: memref<1x128x256xbf16, #tpu.memory_space<vmem>>) attributes {dimension_semantics = [#tpu.dimension_semantics<parallel>, #tpu.dimension_semantics<parallel>], iteration_bounds = array<i64: 2, 2>, scalar_prefetch = 0 : i64, scratch_operands = 0 : i64, tpu.core_type = #tpu.core_type<tc>, window_params = [{transform_indices = @transform_0, window_bounds = array<i64: 1, 128, 256>}, {transform_indices = @transform_1, window_bounds = array<i64: 1, 6, 256>}, {pipeline_mode = #tpu.pipeline_mode<synchronous>, transform_indices = @transform_2, window_bounds = array<i64: 256, 768>}, {pipeline_mode = #tpu.pipeline_mode<synchronous>, transform_indices = @transform_3, window_bounds = array<i64: 1, 768>}, {transform_indices = @transform_4, window_bounds = array<i64: 1, 128, 256>}, {transform_indices = @transform_5, window_bounds = array<i64: 1, 128, 256>}, {transform_indices = @transform_6, window_bounds = array<i64: 1, 128, 256>}]} {
    %c0 = arith.constant 0 : index
    %c0_0 = arith.constant 0 : index
    %c0_1 = arith.constant 0 : index
    %0 = vector.load %arg2[%c0, %c0_0, %c0_1] : memref<1x128x256xf32, #tpu.memory_space<vmem>>, vector<1x128x256xf32>
    %1 = vector.shape_cast %0 : vector<1x128x256xf32> to vector<128x256xf32>
    %c0_2 = arith.constant 0 : index
    %c0_3 = arith.constant 0 : index
    %c0_4 = arith.constant 0 : index
    %2 = vector.load %arg3[%c0_2, %c0_3, %c0_4] : memref<1x6x256xf32, #tpu.memory_space<vmem>>, vector<1x6x256xf32>
    %3 = vector.shape_cast %2 : vector<1x6x256xf32> to vector<6x256xf32>
    %4 = vector.extract_strided_slice %3 {offsets = [0, 0], sizes = [1, 256], strides = [1, 1]} : vector<6x256xf32> to vector<1x256xf32>
    %5 = vector.extract_strided_slice %3 {offsets = [1, 0], sizes = [1, 256], strides = [1, 1]} : vector<6x256xf32> to vector<1x256xf32>
    %cst = arith.constant dense<0.000000e+00> : vector<128xf32>
    %6 = vector.multi_reduction <add>, %1, %cst [1] : vector<128x256xf32> to vector<128xf32>
    %7 = vector.shape_cast %6 : vector<128xf32> to vector<128x1xf32>
    %cst_5 = arith.constant 2.560000e+02 : f32
    %8 = vector.broadcast %cst_5 : f32 to vector<128x1xf32>
    %9 = arith.divf %7, %8 : vector<128x1xf32>
    %10 = vector.broadcast %9 : vector<128x1xf32> to vector<128x256xf32>
    %11 = arith.subf %1, %10 : vector<128x256xf32>
    %12 = arith.mulf %11, %11 : vector<128x256xf32>
    %cst_6 = arith.constant dense<0.000000e+00> : vector<128xf32>
    %13 = vector.multi_reduction <add>, %12, %cst_6 [1] : vector<128x256xf32> to vector<128xf32>
    %14 = vector.shape_cast %13 : vector<128xf32> to vector<128x1xf32>
    %cst_7 = arith.constant 2.560000e+02 : f32
    %15 = vector.broadcast %cst_7 : f32 to vector<128x1xf32>
    %16 = arith.divf %14, %15 : vector<128x1xf32>
    %17 = vector.broadcast %9 : vector<128x1xf32> to vector<128x256xf32>
    %18 = arith.subf %1, %17 : vector<128x256xf32>
    %cst_8 = arith.constant 9.99999997E-7 : f32
    %19 = vector.broadcast %cst_8 : f32 to vector<128x1xf32>
    %20 = arith.addf %16, %19 : vector<128x1xf32>
    %21 = math.rsqrt %20 : vector<128x1xf32>
    %22 = vector.broadcast %21 : vector<128x1xf32> to vector<128x256xf32>
    %23 = arith.mulf %18, %22 : vector<128x256xf32>
    %cst_9 = arith.constant 1.000000e+00 : f32
    %24 = vector.broadcast %cst_9 : f32 to vector<1x256xf32>
    %25 = arith.addf %24, %5 : vector<1x256xf32>
    %26 = vector.broadcast %25 : vector<1x256xf32> to vector<128x256xf32>
    %27 = arith.mulf %23, %26 : vector<128x256xf32>
    %28 = vector.broadcast %4 : vector<1x256xf32> to vector<128x256xf32>
    %29 = arith.addf %27, %28 : vector<128x256xf32>
    %30 = arith.truncf %29 : vector<128x256xf32> to vector<128x256xbf16>
    %c0_10 = arith.constant 0 : index
    %c0_11 = arith.constant 0 : index
    %31 = vector.load %arg4[%c0_10, %c0_11] : memref<256x768xbf16, #tpu.memory_space<vmem>>, vector<256x768xbf16>
    %cst_12 = arith.constant dense<0.000000e+00> : vector<128x768xf32>
    %32 = tpu.matmul %30, %31, %cst_12 {dimension_numbers = #tpu.dot_dimension_numbers<[1], [0], [0], [1], [0, 0, 1, 1], [], []>} : vector<128x256xbf16>, vector<256x768xbf16>, vector<128x768xf32> -> vector<128x768xf32>
    %c0_13 = arith.constant 0 : index
    %c0_14 = arith.constant 0 : index
    %33 = vector.load %arg5[%c0_13, %c0_14] : memref<1x768xf32, #tpu.memory_space<vmem>>, vector<1x768xf32>
    %34 = vector.broadcast %33 : vector<1x768xf32> to vector<128x768xf32>
    %35 = arith.addf %32, %34 : vector<128x768xf32>
    %36 = vector.extract_strided_slice %35 {offsets = [0, 0], sizes = [128, 256], strides = [1, 1]} : vector<128x768xf32> to vector<128x256xf32>
    %cst_15 = arith.constant 2.500000e-01 : f32
    %37 = vector.broadcast %cst_15 : f32 to vector<128x256xf32>
    %38 = arith.mulf %36, %37 : vector<128x256xf32>
    %39 = arith.truncf %38 : vector<128x256xf32> to vector<128x256xbf16>
    %c0_16 = arith.constant 0 : index
    %c0_17 = arith.constant 0 : index
    %c0_18 = arith.constant 0 : index
    %40 = vector.load %arg6[%c0_16, %c0_17, %c0_18] : memref<1x128x256xbf16, #tpu.memory_space<vmem>>, vector<1x128x256xbf16>
    %41 = vector.shape_cast %40 : vector<1x128x256xbf16> to vector<128x256xbf16>
    %42 = vector.shape_cast %39 : vector<128x256xbf16> to vector<1x128x256xbf16>
    tpu.vector_store %arg6[%c0_16, %c0_17, %c0_18], %42 {strides = array<i32>} : memref<1x128x256xbf16, #tpu.memory_space<vmem>>, vector<1x128x256xbf16>,
    %43 = vector.extract_strided_slice %35 {offsets = [0, 256], sizes = [128, 256], strides = [1, 1]} : vector<128x768xf32> to vector<128x256xf32>
    %44 = arith.truncf %43 : vector<128x256xf32> to vector<128x256xbf16>
    %c0_19 = arith.constant 0 : index
    %c0_20 = arith.constant 0 : index
    %c0_21 = arith.constant 0 : index
    %45 = vector.load %arg7[%c0_19, %c0_20, %c0_21] : memref<1x128x256xbf16, #tpu.memory_space<vmem>>, vector<1x128x256xbf16>
    %46 = vector.shape_cast %45 : vector<1x128x256xbf16> to vector<128x256xbf16>
    %47 = vector.shape_cast %44 : vector<128x256xbf16> to vector<1x128x256xbf16>
    tpu.vector_store %arg7[%c0_19, %c0_20, %c0_21], %47 {strides = array<i32>} : memref<1x128x256xbf16, #tpu.memory_space<vmem>>, vector<1x128x256xbf16>,
    %48 = vector.extract_strided_slice %35 {offsets = [0, 512], sizes = [128, 256], strides = [1, 1]} : vector<128x768xf32> to vector<128x256xf32>
    %49 = arith.truncf %48 : vector<128x256xf32> to vector<128x256xbf16>
    %c0_22 = arith.constant 0 : index
    %c0_23 = arith.constant 0 : index
    %c0_24 = arith.constant 0 : index
    %50 = vector.load %arg8[%c0_22, %c0_23, %c0_24] : memref<1x128x256xbf16, #tpu.memory_space<vmem>>, vector<1x128x256xbf16>
    %51 = vector.shape_cast %50 : vector<1x128x256xbf16> to vector<128x256xbf16>
    %52 = vector.shape_cast %49 : vector<128x256xbf16> to vector<1x128x256xbf16>
    tpu.vector_store %arg8[%c0_22, %c0_23, %c0_24], %52 {strides = array<i32>} : memref<1x128x256xbf16, #tpu.memory_space<vmem>>, vector<1x128x256xbf16>,
    return
  }
  func.func @transform_0(%arg0: i32, %arg1: i32) -> (i32, i32, i32) {
    %c0_i32 = arith.constant 0 : i32
    %c0_i32_0 = arith.constant 0 : i32
    return %arg0, %arg1, %c0_i32 : i32, i32, i32
  }
  func.func @transform_1(%arg0: i32, %arg1: i32) -> (i32, i32, i32) {
    %c0_i32 = arith.constant 0 : i32
    %c0_i32_0 = arith.constant 0 : i32
    %c0_i32_1 = arith.constant 0 : i32
    return %arg0, %c0_i32, %c0_i32_0 : i32, i32, i32
  }
  func.func @transform_2(%arg0: i32, %arg1: i32) -> (i32, i32) {
    %c0_i32 = arith.constant 0 : i32
    %c0_i32_0 = arith.constant 0 : i32
    %c0_i32_1 = arith.constant 0 : i32
    return %c0_i32, %c0_i32_0 : i32, i32
  }
  func.func @transform_3(%arg0: i32, %arg1: i32) -> (i32, i32) {
    %c0_i32 = arith.constant 0 : i32
    %c0_i32_0 = arith.constant 0 : i32
    %c0_i32_1 = arith.constant 0 : i32
    return %c0_i32, %c0_i32_0 : i32, i32
  }
  func.func @transform_4(%arg0: i32, %arg1: i32) -> (i32, i32, i32) {
    %c0_i32 = arith.constant 0 : i32
    %c0_i32_0 = arith.constant 0 : i32
    return %arg0, %arg1, %c0_i32 : i32, i32, i32
  }
  func.func @transform_5(%arg0: i32, %arg1: i32) -> (i32, i32, i32) {
    %c0_i32 = arith.constant 0 : i32
    %c0_i32_0 = arith.constant 0 : i32
    return %arg0, %arg1, %c0_i32 : i32, i32, i32
  }
  func.func @transform_6(%arg0: i32, %arg1: i32) -> (i32, i32, i32) {
    %c0_i32 = arith.constant 0 : i32
    %c0_i32_0 = arith.constant 0 : i32
    return %arg0, %arg1, %c0_i32 : i32, i32, i32
  }
}

</mosaic_0001>

<llo_original>
// kernel: tpu_custom_call.1
$region0: #{tpu_custom_call.1}
  #allocation0 [shape = 'u32[]', space=smem, size = 0x4, offset = 0x4, fixed_abs, tag = 'smem constant byte address 0x4 - core index']
  #allocation1 [shape = 'u32[72,128]{1,0:T(1,128)}', space=vmem, size = 0x9000, scoped, tag = 'internal scratch']
  %s0 = inlined_call_operand.hbm [shape: f32[2,256,256], index: 0, kind: input, shape index: {}]
  %s1 = inlined_call_operand.vmem [shape: f32[2,6,256], index: 1, kind: input, shape index: {}]
  %s2 = inlined_call_operand.hbm [shape: bf16[256,768], index: 2, kind: input, shape index: {}]
  %s3 = inlined_call_operand.vmem [shape: f32[1,768], index: 3, kind: input, shape index: {}]
  %s4 = inlined_call_operand.hbm [shape: bf16[2,256,256], index: 4, kind: output, shape index: {0}]
  %s5 = inlined_call_operand.hbm [shape: bf16[2,256,256], index: 5, kind: output, shape index: {1}]
  %s6 = inlined_call_operand.hbm [shape: bf16[2,256,256], index: 6, kind: output, shape index: {2}]
  %7 = xla_tuple %s4, %s5, %s6
  %s8 = sld [smem:[#allocation0]]
  $region73: #{tpu_custom_call.1} parent=0
    _
  %s10 = ssub.s32 1, %s8
  %s11 = scalar_select 0, %s10, %s8
  $region1: #{tpu_custom_call.1} parent=0
    #allocation2 [shape = 'u8[262144]{0}', space=vmem, size = 0x40000, scoped, tag = 'input window, operand 0']
    #allocation3 [shape = 's32[2]{0}', space=sflag, size = 0x8, scoped, tag = 'scoped memory for tpu_custom_call.1']
    #allocation4 [shape = 's32[2]{0}', space=sflag, size = 0x8, scoped, tag = 'scoped memory for tpu_custom_call.1']
    #allocation5 [shape = 'u8[393216]{0}', space=vmem, size = 0x60000, scoped, tag = 'input window, operand 2, single buffered']
    #allocation6 [shape = 's32[1]{0}', space=sflag, size = 0x4, scoped, tag = 'scoped memory for tpu_custom_call.1']
    #allocation7 [shape = 'u8[131072]{0}', space=vmem, size = 0x20000, scoped, tag = 'output window, operand 0']
    #allocation8 [shape = 'u8[131072]{0}', space=vmem, size = 0x20000, scoped, tag = 'output window, operand 1']
    #allocation9 [shape = 's32[2]{0}', space=sflag, size = 0x8, scoped, tag = 'scoped memory for tpu_custom_call.1']
    #allocation10 [shape = 'u8[131072]{0}', space=vmem, size = 0x20000, scoped, tag = 'output window, operand 2']
    %12 = vsyncpa [#allocation3], 0
    %s13 = scalar_lea.sflag [#allocation3], 1
    %14 = vsyncpa %s13, 0
    %15 = vsyncpa [#allocation6], 0
    %16 = vsyncpa [#allocation4], 0
    %s17 = scalar_lea.sflag [#allocation4], 1
    %18 = vsyncpa %s17, 0
    %19 = vsyncpa [#allocation9], 0
    %s20 = scalar_lea.sflag [#allocation9], 1
    %21 = vsyncpa %s20, 0
    loop: start=0, step=1, limit=6
    $region2: #{tpu_custom_call.1} parent=1 // loop_pre_header
      _
    $region3: #{tpu_custom_call.1} parent=1 // loop_header
      %s23 = sphi 0, %s27
      %p24 = scmp.ge.s32.totalorder %s23, 6
      %s30 = sphi 0, %s42
      %s31 = sphi 0, %s38
      %s32 = sphi 0, %s30
      %s33 = sphi 0, %s31
      %s34 = sphi 0, %s32
      %s35 = sphi 0, %s33
      %s47 = sphi 0, %s49
      %s50 = sphi 0, %s47
      %s51 = sphi 0, %s50
      %s67 = sphi 0, %s51
      %s73 = sphi 0, %s75
      %s76 = sphi 0, %s73
      %s77 = sphi 0, %s76
      %s93 = sphi 0, %s77
      %s97 = sphi 0, %s97
      %s99 = sphi 0, %s97
      %s100 = sphi 0, %s99
      %s114 = sphi 0, %s100
      %s118 = sphi 0, %s118
      %s120 = sphi 0, %s118
      %s121 = sphi 0, %s120
      %s135 = sphi 0, %s121
      %s143 = sphi 0, %s145
      %s146 = sphi 0, %s143
      %s147 = sphi 0, %s146
      %s163 = sphi 0, %s147
      %s171 = sphi 0, %s173
      %s174 = sphi 0, %s171
      %s175 = sphi 0, %s174
      %s191 = sphi 0, %s175
      %s199 = sphi 0, %s201
      %s202 = sphi 0, %s199
      %s203 = sphi 0, %s202
      %s219 = sphi 0, %s203
    $region4: #{tpu_custom_call.1} parent=1 // loop_header_branch
      %26 = sbr.rel (%p24) target = $region8
    $region5: #{tpu_custom_call.1} parent=1 // loop_body
      %s28 = ssub.s32 %s23, 1
      %s29 = ssub.s32 %s23, 2
      %s36 = sadd.s32 1, %s31
      %p37 = scmp.ge.s32.totalorder %s36, 2
      %s38 = scalar_select %p37, 0, %s36
      %s39 = sadd.s32 1, %s30
      %s40 = scalar_select %p37, %s39, %s30
      %p41 = scmp.ge.s32.totalorder %s40, 2
      %s42 = scalar_select %p41, 0, %s40
      %s43 = ssub.s32 %s30, %s42
      %s44 = ssub.s32 %s31, %s38
      %s45 = sor.u32 %s43, %s44
      %p46 = scmp.eq.s32.totalorder %s45, 0
      %s48 = sadd.s32 %s47, 1
      %s49 = scalar_select %p46, %s47, %s48
      %p52 = pneg %p46
      %p53 = scmp.eq.s32.totalorder %s23, 3
      %p54 = por %p52, %p53
      %p55 = scmp.ne.s32.totalorder %s47, %s50
      %p56 = scmp.eq.s32.totalorder %s23, 0
      %p57 = por %p55, %p56
      %p58 = scmp.ne.s32.totalorder %s47, %s50
      %p59 = scmp.eq.s32.totalorder %s28, 3
      %p60 = por %p58, %p59
      %p61 = scmp.ne.s32.totalorder %s50, %s51
      %p62 = scmp.eq.s32.totalorder %s28, 0
      %p63 = por %p61, %p62
      %p64 = scmp.ne.s32.totalorder %s50, %s51
      %p65 = scmp.eq.s32.totalorder %s29, 3
      %p66 = por %p64, %p65
      %p68 = scmp.ne.s32.totalorder %s51, %s67
      %p69 = scmp.eq.s32.totalorder %s29, 0
      %p70 = por %p68, %p69
      %s71 = ssub.s32 %s30, %s42
      %p72 = scmp.eq.s32.totalorder %s71, 0
      %s74 = sadd.s32 %s73, 1
      %s75 = scalar_select %p72, %s73, %s74
      %p78 = pneg %p72
      %p79 = scmp.eq.s32.totalorder %s23, 3
      %p80 = por %p78, %p79
      %p81 = scmp.ne.s32.totalorder %s73, %s76
      %p82 = scmp.eq.s32.totalorder %s23, 0
      %p83 = por %p81, %p82
      %p84 = scmp.ne.s32.totalorder %s73, %s76
      %p85 = scmp.eq.s32.totalorder %s28, 3
      %p86 = por %p84, %p85
      %p87 = scmp.ne.s32.totalorder %s76, %s77
      %p88 = scmp.eq.s32.totalorder %s28, 0
      %p89 = por %p87, %p88
      %p90 = scmp.ne.s32.totalorder %s76, %s77
      %p91 = scmp.eq.s32.totalorder %s29, 3
      %p92 = por %p90, %p91
      %p94 = scmp.ne.s32.totalorder %s77, %s93
      %p95 = scmp.eq.s32.totalorder %s29, 0
      %p96 = por %p94, %p95
      %s98 = sadd.s32 %s97, 1
      %p101 = scmp.eq.s32.totalorder %s23, 3
      %p102 = scmp.ne.s32.totalorder %s97, %s99
      %p103 = scmp.eq.s32.totalorder %s23, 0
      %p104 = por %p102, %p103
      %p105 = scmp.ne.s32.totalorder %s97, %s99
      %p106 = scmp.eq.s32.totalorder %s28, 3
      %p107 = por %p105, %p106
      %p108 = scmp.ne.s32.totalorder %s99, %s100
      %p109 = scmp.eq.s32.totalorder %s28, 0
      %p110 = por %p108, %p109
      %p111 = scmp.ne.s32.totalorder %s99, %s100
      %p112 = scmp.eq.s32.totalorder %s29, 3
      %p113 = por %p111, %p112
      %p115 = scmp.ne.s32.totalorder %s100, %s114
      %p116 = scmp.eq.s32.totalorder %s29, 0
      %p117 = por %p115, %p116
      %s119 = sadd.s32 %s118, 1
      %p122 = scmp.eq.s32.totalorder %s23, 3
      %p123 = scmp.ne.s32.totalorder %s118, %s120
      %p124 = scmp.eq.s32.totalorder %s23, 0
      %p125 = por %p123, %p124
      %p126 = scmp.ne.s32.totalorder %s118, %s120
      %p127 = scmp.eq.s32.totalorder %s28, 3
      %p128 = por %p126, %p127
      %p129 = scmp.ne.s32.totalorder %s120, %s121
      %p130 = scmp.eq.s32.totalorder %s28, 0
      %p131 = por %p129, %p130
      %p132 = scmp.ne.s32.totalorder %s120, %s121
      %p133 = scmp.eq.s32.totalorder %s29, 3
      %p134 = por %p132, %p133
      %p136 = scmp.ne.s32.totalorder %s121, %s135
      %p137 = scmp.eq.s32.totalorder %s29, 0
      %p138 = por %p136, %p137
      %s139 = ssub.s32 %s30, %s42
      %s140 = ssub.s32 %s31, %s38
      %s141 = sor.u32 %s139, %s140
      %p142 = scmp.eq.s32.totalorder %s141, 0
      %s144 = sadd.s32 %s143, 1
      %s145 = scalar_select %p142, %s143, %s144
      %p148 = pneg %p142
      %p149 = scmp.eq.s32.totalorder %s23, 3
      %p150 = por %p148, %p149
      %p151 = scmp.ne.s32.totalorder %s143, %s146
      %p152 = scmp.eq.s32.totalorder %s23, 0
      %p153 = por %p151, %p152
      %p154 = scmp.ne.s32.totalorder %s143, %s146
      %p155 = scmp.eq.s32.totalorder %s28, 3
      %p156 = por %p154, %p155
      %p157 = scmp.ne.s32.totalorder %s146, %s147
      %p158 = scmp.eq.s32.totalorder %s28, 0
      %p159 = por %p157, %p158
      %p160 = scmp.ne.s32.totalorder %s146, %s147
      %p161 = scmp.eq.s32.totalorder %s29, 3
      %p162 = por %p160, %p161
      %p164 = scmp.ne.s32.totalorder %s147, %s163
      %p165 = scmp.eq.s32.totalorder %s29, 0
      %p166 = por %p164, %p165
      %s167 = ssub.s32 %s30, %s42
      %s168 = ssub.s32 %s31, %s38
      %s169 = sor.u32 %s167, %s168
      %p170 = scmp.eq.s32.totalorder %s169, 0
      %s172 = sadd.s32 %s171, 1
      %s173 = scalar_select %p170, %s171, %s172
      %p176 = pneg %p170
      %p177 = scmp.eq.s32.totalorder %s23, 3
      %p178 = por %p176, %p177
      %p179 = scmp.ne.s32.totalorder %s171, %s174
      %p180 = scmp.eq.s32.totalorder %s23, 0
      %p181 = por %p179, %p180
      %p182 = scmp.ne.s32.totalorder %s171, %s174
      %p183 = scmp.eq.s32.totalorder %s28, 3
      %p184 = por %p182, %p183
      %p185 = scmp.ne.s32.totalorder %s174, %s175
      %p186 = scmp.eq.s32.totalorder %s28, 0
      %p187 = por %p185, %p186
      %p188 = scmp.ne.s32.totalorder %s174, %s175
      %p189 = scmp.eq.s32.totalorder %s29, 3
      %p190 = por %p188, %p189
      %p192 = scmp.ne.s32.totalorder %s175, %s191
      %p193 = scmp.eq.s32.totalorder %s29, 0
      %p194 = por %p192, %p193
      %s195 = ssub.s32 %s30, %s42
      %s196 = ssub.s32 %s31, %s38
      %s197 = sor.u32 %s195, %s196
      %p198 = scmp.eq.s32.totalorder %s197, 0
      %s200 = sadd.s32 %s199, 1
      %s201 = scalar_select %p198, %s199, %s200
      %p204 = pneg %p198
      %p205 = scmp.eq.s32.totalorder %s23, 3
      %p206 = por %p204, %p205
      %p207 = scmp.ne.s32.totalorder %s199, %s202
      %p208 = scmp.eq.s32.totalorder %s23, 0
      %p209 = por %p207, %p208
      %p210 = scmp.ne.s32.totalorder %s199, %s202
      %p211 = scmp.eq.s32.totalorder %s28, 3
      %p212 = por %p210, %p211
      %p213 = scmp.ne.s32.totalorder %s202, %s203
      %p214 = scmp.eq.s32.totalorder %s28, 0
      %p215 = por %p213, %p214
      %p216 = scmp.ne.s32.totalorder %s202, %s203
      %p217 = scmp.eq.s32.totalorder %s29, 3
      %p218 = por %p216, %p217
      %p220 = scmp.ne.s32.totalorder %s203, %s219
      %p221 = scmp.eq.s32.totalorder %s29, 0
      %p222 = por %p220, %p221
      %p223 = scmp.le.s32.totalorder 1, %s23
      %p224 = scmp.lt.s32.totalorder %s23, 5
      %p225 = pnand %p223, %p224
      %p226 = pneg %p225
      // Predicated region
      $region9: #{tpu_custom_call.1} parent=5 // pred_check
        _
      $region10: #{tpu_custom_call.1} parent=5 // pred_check_branch
        %228 = sbr.rel (%p225) target = $region12
      $region11: #{tpu_custom_call.1} parent=5 // pred_region
        %s229 = ssub.s32 %s23, 1
        // Predicated region
        $region13: #{tpu_custom_call.1} parent=11 // pred_check
          %p230 = pneg %p110
        $region14: #{tpu_custom_call.1} parent=11 // pred_check_branch
          %232 = sbr.rel (%p230) target = $region16
        $region15: #{tpu_custom_call.1} parent=11 // pred_region
          %234 = vsyncadd [#allocation6], 0
          %s235 = sshll.u32 %s2, 4
          %s236 = int_to_ptr.hbm [resolvable:$true] %s235
          %s237 = sshll.u32 [#allocation5], 4
          %s238 = int_to_ptr.vmem [resolvable:$true] %s237
          %243 = dma.hbm_to_vmem [thread:$0]  %s236, 12288, %s238, [#allocation6], 384, 384, 24
        $region16: #{tpu_custom_call.1} parent=11 // pred_fallthru
          _
        // Predicated region
        $region17: #{tpu_custom_call.1} parent=11 // pred_check
          %p244 = pneg %p131
        $region18: #{tpu_custom_call.1} parent=11 // pred_check_branch
          %246 = sbr.rel (%p244) target = $region20
        $region19: #{tpu_custom_call.1} parent=11 // pred_region
          _
        $region20: #{tpu_custom_call.1} parent=11 // pred_fallthru
          _
      $region12: #{tpu_custom_call.1} parent=5 // pred_fallthru
        _
      %p247 = scmp.lt.s32.totalorder %s23, 4
      // Predicated region
      $region21: #{tpu_custom_call.1} parent=5 // pred_check
        %p248 = pneg %p247
      $region22: #{tpu_custom_call.1} parent=5 // pred_check_branch
        %250 = sbr.rel (%p248) target = $region24
      $region23: #{tpu_custom_call.1} parent=5 // pred_region
        // Predicated region
        $region25: #{tpu_custom_call.1} parent=23 // pred_check
          %p251 = pneg %p57
        $region26: #{tpu_custom_call.1} parent=23 // pred_check_branch
          %253 = sbr.rel (%p251) target = $region28
        $region27: #{tpu_custom_call.1} parent=23 // pred_region
          %s254 = sand.u32 %s47, 1
          %s255 = scalar_lea.sflag [#allocation3], %s254
          %s256 = sand.u32 %s47, 1
          %s257 = smul.addr %s256, 256
          %s258 = scalar_lea.vmem [#allocation2], %s257
          %s259 = smul.u32 16, %s31
          %261 = vsyncadd %s255, 0
          %s262 = smul.addr %s259, 2
          %s263 = smul.addr %s30, 64
          %s264 = sadd.s32 %s262, %s263
          %s265 = smul.addr %s264, 8
          %s266 = scalar_lea.hbm %s0, %s265
          %s267 = sshll.u32 %s266, 4
          %s268 = int_to_ptr.hbm [resolvable:$true] %s267
          %s269 = sshll.u32 %s258, 4
          %s270 = int_to_ptr.vmem [resolvable:$true] %s269
          %275 = dma.hbm_to_vmem [thread:$0]  %s268, 4096, %s270, %s255, 256, 256, 16
        $region28: #{tpu_custom_call.1} parent=23 // pred_fallthru
          _
        // Predicated region
        $region29: #{tpu_custom_call.1} parent=23 // pred_check
          %p276 = pneg %p83
        $region30: #{tpu_custom_call.1} parent=23 // pred_check_branch
          %278 = sbr.rel (%p276) target = $region32
        $region31: #{tpu_custom_call.1} parent=23 // pred_region
          %p279 = scmp.lt.s32.totalorder %s30, 1
          %s280 = scalar_select %p279, %s30, 1
          %s281 = smul.addr %s280, 2
          %s282 = smul.addr %s281, 8
          %s283 = scalar_lea.vmem %s1, %s282
        $region32: #{tpu_custom_call.1} parent=23 // pred_fallthru
          _
      $region24: #{tpu_custom_call.1} parent=5 // pred_fallthru
        _
      %p284 = scmp.le.s32.totalorder 1, %s23
      %p285 = scmp.lt.s32.totalorder %s23, 5
      %p286 = pnand %p284, %p285
      %p287 = pneg %p286
      // Predicated region
      $region33: #{tpu_custom_call.1} parent=5 // pred_check
        _
      $region34: #{tpu_custom_call.1} parent=5 // pred_check_branch
        %289 = sbr.rel (%p286) target = $region36
      $region35: #{tpu_custom_call.1} parent=5 // pred_region
        %s290 = ssub.s32 %s23, 1
        %s291 = sand.u32 %s50, 1
        %s292 = scalar_lea.sflag [#allocation3], %s291
        %s293 = sand.u32 %s50, 1
        %s294 = smul.addr %s293, 256
        %s295 = scalar_lea.vmem [#allocation2], %s294
        // Predicated region
        $region37: #{tpu_custom_call.1} parent=35 // pred_check
          %p296 = pneg %p63
        $region38: #{tpu_custom_call.1} parent=35 // pred_check_branch
          %298 = sbr.rel (%p296) target = $region40
        $region39: #{tpu_custom_call.1} parent=35 // pred_region
          %300 = dma.done %s292, 4096
        $region40: #{tpu_custom_call.1} parent=35 // pred_fallthru
          _
        // Predicated region
        $region41: #{tpu_custom_call.1} parent=35 // pred_check
          %p301 = pneg %p110
        $region42: #{tpu_custom_call.1} parent=35 // pred_check_branch
          %303 = sbr.rel (%p301) target = $region44
        $region43: #{tpu_custom_call.1} parent=35 // pred_region
          %305 = dma.done [#allocation6], 12288
        $region44: #{tpu_custom_call.1} parent=35 // pred_fallthru
          _
        %s306 = sand.u32 %s50, 1
        %s307 = scalar_lea.sflag [#allocation3], %s306
        %s308 = sand.u32 %s50, 1
        %s309 = smul.addr %s308, 256
        %s310 = scalar_lea.vmem [#allocation2], %s309
        %p311 = pneg %p63
        %p312 = pneg %p60
        %p313 = scmp.lt.s32.totalorder %s32, 1
        %s314 = scalar_select %p313, %s32, 1
        %s315 = smul.addr %s314, 2
        %s316 = smul.addr %s315, 8
        %s317 = scalar_lea.vmem %s1, %s316
        %p318 = pneg %p89
        %p319 = pneg %p86
        %p320 = pneg %p110
        %p321 = pneg %p107
        %p322 = pneg %p131
        %p323 = pneg %p128
        %p324 = pneg %p159
        %p325 = pneg %p156
        %s326 = sand.u32 %s146, 1
        %s327 = scalar_lea.sflag [#allocation4], %s326
        %s328 = sand.u32 %s146, 1
        %s329 = smul.addr %s328, 128
        %s330 = scalar_lea.vmem [#allocation7], %s329
        %p331 = pneg %p187
        %p332 = pneg %p184
        %s333 = sand.u32 %s28, 1
        %s334 = scalar_lea.sflag [#allocation9], %s333
        %s335 = sand.u32 %s174, 1
        %s336 = smul.addr %s335, 128
        %s337 = scalar_lea.vmem [#allocation8], %s336
        %p338 = pneg %p215
        %p339 = pneg %p212
        %s340 = sand.u32 %s28, 1
        %s341 = scalar_lea.sflag [#allocation9], %s340
        %s342 = sand.u32 %s202, 1
        %s343 = smul.addr %s342, 128
        %s344 = scalar_lea.vmem [#allocation10], %s343
        %s345 = smul.u32 16, %s33
        %p346 = scmp.lt.s32.totalorder %s32, 1
        %s347 = scalar_select %p346, %s32, 1
        %s348 = smul.addr %s347, 2
        %s349 = smul.addr %s348, 8
        %s350 = scalar_lea.vmem %s1, %s349
        %s351 = smul.u32 16, %s33
        %s352 = smul.u32 16, %s33
        %s353 = smul.u32 16, %s33
        %v354 = vld [vmem:[%s295] sm:$0xff]
        %v355 = vld [vmem:[%s295 + $0x8] sm:$0xff]
        %v356 = vld [vmem:[%s295 + $0x10] sm:$0xff]
        %v357 = vld [vmem:[%s295 + $0x18] sm:$0xff]
        %v358 = vld [vmem:[%s295 + $0x20] sm:$0xff]
        %v359 = vld [vmem:[%s295 + $0x28] sm:$0xff]
        %v360 = vld [vmem:[%s295 + $0x30] sm:$0xff]
        %v361 = vld [vmem:[%s295 + $0x38] sm:$0xff]
        %v362 = vld [vmem:[%s295 + $0x40] sm:$0xff]
        %v363 = vld [vmem:[%s295 + $0x48] sm:$0xff]
        %v364 = vld [vmem:[%s295 + $0x50] sm:$0xff]
        %v365 = vld [vmem:[%s295 + $0x58] sm:$0xff]
        %v366 = vld [vmem:[%s295 + $0x60] sm:$0xff]
        %v367 = vld [vmem:[%s295 + $0x68] sm:$0xff]
        %v368 = vld [vmem:[%s295 + $0x70] sm:$0xff]
        %v369 = vld [vmem:[%s295 + $0x78] sm:$0xff]
        %v370 = vld [vmem:[%s295 + $0x80] sm:$0xff]
        %v371 = vld [vmem:[%s295 + $0x88] sm:$0xff]
        %v372 = vld [vmem:[%s295 + $0x90] sm:$0xff]
        %v373 = vld [vmem:[%s295 + $0x98] sm:$0xff]
        %v374 = vld [vmem:[%s295 + $0xa0] sm:$0xff]
        %v375 = vld [vmem:[%s295 + $0xa8] sm:$0xff]
        %v376 = vld [vmem:[%s295 + $0xb0] sm:$0xff]
        %v377 = vld [vmem:[%s295 + $0xb8] sm:$0xff]
        %v378 = vld [vmem:[%s295 + $0xc0] sm:$0xff]
        %v379 = vld [vmem:[%s295 + $0xc8] sm:$0xff]
        %v380 = vld [vmem:[%s295 + $0xd0] sm:$0xff]
        %v381 = vld [vmem:[%s295 + $0xd8] sm:$0xff]
        %v382 = vld [vmem:[%s295 + $0xe0] sm:$0xff]
        %v383 = vld [vmem:[%s295 + $0xe8] sm:$0xff]
        %v384 = vld [vmem:[%s295 + $0xf0] sm:$0xff]
        %v385 = vld [vmem:[%s295 + $0xf8] sm:$0xff]
        %v386 = vld [vmem:[%s350] sm:$0x3f]
        %v387 = vld [vmem:[%s350 + $0x8] sm:$0x3f]
        %v388 = vadd.f32 %v354, %v355
        %389 = vadd.xlane.f32.xlu0 %v388
        %v390 = vpop.xlane.xlu0 %389
        %v391 = vadd.f32 %v356, %v357
        %392 = vadd.xlane.f32.xlu0 %v391
        %v393 = vpop.xlane.xlu0 %392
        %v394 = vadd.f32 %v358, %v359
        %395 = vadd.xlane.f32.xlu0 %v394
        %v396 = vpop.xlane.xlu0 %395
        %v397 = vadd.f32 %v360, %v361
        %398 = vadd.xlane.f32.xlu0 %v397
        %v399 = vpop.xlane.xlu0 %398
        %v400 = vadd.f32 %v362, %v363
        %401 = vadd.xlane.f32.xlu0 %v400
        %v402 = vpop.xlane.xlu0 %401
        %v403 = vadd.f32 %v364, %v365
        %404 = vadd.xlane.f32.xlu0 %v403
        %v405 = vpop.xlane.xlu0 %404
        %v406 = vadd.f32 %v366, %v367
        %407 = vadd.xlane.f32.xlu0 %v406
        %v408 = vpop.xlane.xlu0 %407
        %v409 = vadd.f32 %v368, %v369
        %410 = vadd.xlane.f32.xlu0 %v409
        %v411 = vpop.xlane.xlu0 %410
        %v412 = vadd.f32 %v370, %v371
        %413 = vadd.xlane.f32.xlu0 %v412
        %v414 = vpop.xlane.xlu0 %413
        %v415 = vadd.f32 %v372, %v373
        %416 = vadd.xlane.f32.xlu0 %v415
        %v417 = vpop.xlane.xlu0 %416
        %v418 = vadd.f32 %v374, %v375
        %419 = vadd.xlane.f32.xlu0 %v418
        %v420 = vpop.xlane.xlu0 %419
        %v421 = vadd.f32 %v376, %v377
        %422 = vadd.xlane.f32.xlu0 %v421
        %v423 = vpop.xlane.xlu0 %422
        %v424 = vadd.f32 %v378, %v379
        %425 = vadd.xlane.f32.xlu0 %v424
        %v426 = vpop.xlane.xlu0 %425
        %v427 = vadd.f32 %v380, %v381
        %428 = vadd.xlane.f32.xlu0 %v427
        %v429 = vpop.xlane.xlu0 %428
        %v430 = vadd.f32 %v382, %v383
        %431 = vadd.xlane.f32.xlu0 %v430
        %v432 = vpop.xlane.xlu0 %431
        %v433 = vadd.f32 %v384, %v385
        %434 = vadd.xlane.f32.xlu0 %v433
        %v435 = vpop.xlane.xlu0 %434
        %v436 = vrcp.pop 256.0
        %v437 = vmul.f32 256.0, %v436
        %v438 = vsub.f32 1.0, %v437
        %v439 = vmul.f32 %v436, %v438
        %v440 = vadd.f32 %v436, %v439
        %vm441 = vweird.f32 %v436
        %v442 = vsel %vm441, %v436, %v440
        %v443 = vmul.f32 %v390, %v442
        %v444 = vmul.f32 %v393, %v442
        %v445 = vmul.f32 %v396, %v442
        %v446 = vmul.f32 %v399, %v442
        %v447 = vmul.f32 %v402, %v442
        %v448 = vmul.f32 %v405, %v442
        %v449 = vmul.f32 %v408, %v442
        %v450 = vmul.f32 %v411, %v442
        %v451 = vmul.f32 %v414, %v442
        %v452 = vmul.f32 %v417, %v442
        %v453 = vmul.f32 %v420, %v442
        %v454 = vmul.f32 %v423, %v442
        %v455 = vmul.f32 %v426, %v442
        %v456 = vmul.f32 %v429, %v442
        %v457 = vmul.f32 %v432, %v442
        %v458 = vmul.f32 %v435, %v442
        %v459 = vsub.f32 %v354, %v443
        %v460 = vsub.f32 %v355, %v443
        %v461 = vsub.f32 %v356, %v444
        %v462 = vsub.f32 %v357, %v444
        %v463 = vsub.f32 %v358, %v445
        %v464 = vsub.f32 %v359, %v445
        %v465 = vsub.f32 %v360, %v446
        %v466 = vsub.f32 %v361, %v446
        %v467 = vsub.f32 %v362, %v447
        %v468 = vsub.f32 %v363, %v447
        %v469 = vsub.f32 %v364, %v448
        %v470 = vsub.f32 %v365, %v448
        %v471 = vsub.f32 %v366, %v449
        %v472 = vsub.f32 %v367, %v449
        %v473 = vsub.f32 %v368, %v450
        %v474 = vsub.f32 %v369, %v450
        %v475 = vsub.f32 %v370, %v451
        %v476 = vsub.f32 %v371, %v451
        %v477 = vsub.f32 %v372, %v452
        %v478 = vsub.f32 %v373, %v452
        %v479 = vsub.f32 %v374, %v453
        %v480 = vsub.f32 %v375, %v453
        %v481 = vsub.f32 %v376, %v454
        %v482 = vsub.f32 %v377, %v454
        %v483 = vsub.f32 %v378, %v455
        %v484 = vsub.f32 %v379, %v455
        %v485 = vsub.f32 %v380, %v456
        %v486 = vsub.f32 %v381, %v456
        %v487 = vsub.f32 %v382, %v457
        %v488 = vsub.f32 %v383, %v457
        %v489 = vsub.f32 %v384, %v458
        %v490 = vsub.f32 %v385, %v458
        %v491 = vmul.f32 %v459, %v459
        %v492 = vmul.f32 %v460, %v460
        %v493 = vmul.f32 %v461, %v461
        %v494 = vmul.f32 %v462, %v462
        %v495 = vmul.f32 %v463, %v463
        %v496 = vmul.f32 %v464, %v464
        %v497 = vmul.f32 %v465, %v465
        %v498 = vmul.f32 %v466, %v466
        %v499 = vmul.f32 %v467, %v467
        %v500 = vmul.f32 %v468, %v468
        %v501 = vmul.f32 %v469, %v469
        %v502 = vmul.f32 %v470, %v470
        %v503 = vmul.f32 %v471, %v471
        %v504 = vmul.f32 %v472, %v472
        %v505 = vmul.f32 %v473, %v473
        %v506 = vmul.f32 %v474, %v474
        %v507 = vmul.f32 %v475, %v475
        %v508 = vmul.f32 %v476, %v476
        %v509 = vmul.f32 %v477, %v477
        %v510 = vmul.f32 %v478, %v478
        %v511 = vmul.f32 %v479, %v479
        %v512 = vmul.f32 %v480, %v480
        %v513 = vmul.f32 %v481, %v481
        %v514 = vmul.f32 %v482, %v482
        %v515 = vmul.f32 %v483, %v483
        %v516 = vmul.f32 %v484, %v484
        %v517 = vmul.f32 %v485, %v485
        %v518 = vmul.f32 %v486, %v486
        %v519 = vmul.f32 %v487, %v487
        %v520 = vmul.f32 %v488, %v488
        %v521 = vmul.f32 %v489, %v489
        %v522 = vmul.f32 %v490, %v490
        %v523 = vadd.f32 %v491, %v492
        %524 = vadd.xlane.f32.xlu0 %v523
        %v525 = vpop.xlane.xlu0 %524
        %v526 = vadd.f32 %v493, %v494
        %527 = vadd.xlane.f32.xlu0 %v526
        %v528 = vpop.xlane.xlu0 %527
        %v529 = vadd.f32 %v495, %v496
        %530 = vadd.xlane.f32.xlu0 %v529
        %v531 = vpop.xlane.xlu0 %530
        %v532 = vadd.f32 %v497, %v498
        %533 = vadd.xlane.f32.xlu0 %v532
        %v534 = vpop.xlane.xlu0 %533
        %v535 = vadd.f32 %v499, %v500
        %536 = vadd.xlane.f32.xlu0 %v535
        %v537 = vpop.xlane.xlu0 %536
        %v538 = vadd.f32 %v501, %v502
        %539 = vadd.xlane.f32.xlu0 %v538
        %v540 = vpop.xlane.xlu0 %539
        %v541 = vadd.f32 %v503, %v504
        %542 = vadd.xlane.f32.xlu0 %v541
        %v543 = vpop.xlane.xlu0 %542
        %v544 = vadd.f32 %v505, %v506
        %545 = vadd.xlane.f32.xlu0 %v544
        %v546 = vpop.xlane.xlu0 %545
        %v547 = vadd.f32 %v507, %v508
        %548 = vadd.xlane.f32.xlu0 %v547
        %v549 = vpop.xlane.xlu0 %548
        %v550 = vadd.f32 %v509, %v510
        %551 = vadd.xlane.f32.xlu0 %v550
        %v552 = vpop.xlane.xlu0 %551
        %v553 = vadd.f32 %v511, %v512
        %554 = vadd.xlane.f32.xlu0 %v553
        %v555 = vpop.xlane.xlu0 %554
        %v556 = vadd.f32 %v513, %v514
        %557 = vadd.xlane.f32.xlu0 %v556
        %v558 = vpop.xlane.xlu0 %557
        %v559 = vadd.f32 %v515, %v516
        %560 = vadd.xlane.f32.xlu0 %v559
        %v561 = vpop.xlane.xlu0 %560
        %v562 = vadd.f32 %v517, %v518
        %563 = vadd.xlane.f32.xlu0 %v562
        %v564 = vpop.xlane.xlu0 %563
        %v565 = vadd.f32 %v519, %v520
        %566 = vadd.xlane.f32.xlu0 %v565
        %v567 = vpop.xlane.xlu0 %566
        %v568 = vadd.f32 %v521, %v522
        %569 = vadd.xlane.f32.xlu0 %v568
        %v570 = vpop.xlane.xlu0 %569
        %v571 = vmul.f32 %v525, %v442
        %v572 = vmul.f32 %v528, %v442
        %v573 = vmul.f32 %v531, %v442
        %v574 = vmul.f32 %v534, %v442
        %v575 = vmul.f32 %v537, %v442
        %v576 = vmul.f32 %v540, %v442
        %v577 = vmul.f32 %v543, %v442
        %v578 = vmul.f32 %v546, %v442
        %v579 = vmul.f32 %v549, %v442
        %v580 = vmul.f32 %v552, %v442
        %v581 = vmul.f32 %v555, %v442
        %v582 = vmul.f32 %v558, %v442
        %v583 = vmul.f32 %v561, %v442
        %v584 = vmul.f32 %v564, %v442
        %v585 = vmul.f32 %v567, %v442
        %v586 = vmul.f32 %v570, %v442
        %v587 = vadd.f32 %v571, 1e-06
        %v588 = vadd.f32 %v572, 1e-06
        %v589 = vadd.f32 %v573, 1e-06
        %v590 = vadd.f32 %v574, 1e-06
        %v591 = vadd.f32 %v575, 1e-06
        %v592 = vadd.f32 %v576, 1e-06
        %v593 = vadd.f32 %v577, 1e-06
        %v594 = vadd.f32 %v578, 1e-06
        %v595 = vadd.f32 %v579, 1e-06
        %v596 = vadd.f32 %v580, 1e-06
        %v597 = vadd.f32 %v581, 1e-06
        %v598 = vadd.f32 %v582, 1e-06
        %v599 = vadd.f32 %v583, 1e-06
        %v600 = vadd.f32 %v584, 1e-06
        %v601 = vadd.f32 %v585, 1e-06
        %v602 = vadd.f32 %v586, 1e-06
        %v603 = vrsqrt.pop %v587
        %v604 = vmul.f32 %v603, %v587
        %v605 = vmul.f32 %v604, %v603
        %v606 = vmul.f32 0.5, %v605
        %v607 = vsub.f32 1.5, %v606
        %v608 = vmul.f32 %v603, %v607
        %vm609 = vweird.f32 %v587
        %vm610 = vweird.f32 %v603
        %vm611 = vmor %vm609, %vm610
        %v612 = vsel %vm611, %v603, %v608
        %v613 = vrsqrt.pop %v588
        %v614 = vmul.f32 %v613, %v588
        %v615 = vmul.f32 %v614, %v613
        %v616 = vmul.f32 0.5, %v615
        %v617 = vsub.f32 1.5, %v616
        %v618 = vmul.f32 %v613, %v617
        %vm619 = vweird.f32 %v588
        %vm620 = vweird.f32 %v613
        %vm621 = vmor %vm619, %vm620
        %v622 = vsel %vm621, %v613, %v618
        %v623 = vrsqrt.pop %v589
        %v624 = vmul.f32 %v623, %v589
        %v625 = vmul.f32 %v624, %v623
        %v626 = vmul.f32 0.5, %v625
        %v627 = vsub.f32 1.5, %v626
        %v628 = vmul.f32 %v623, %v627
        %vm629 = vweird.f32 %v589
        %vm630 = vweird.f32 %v623
        %vm631 = vmor %vm629, %vm630
        %v632 = vsel %vm631, %v623, %v628
        %v633 = vrsqrt.pop %v590
        %v634 = vmul.f32 %v633, %v590
        %v635 = vmul.f32 %v634, %v633
        %v636 = vmul.f32 0.5, %v635
        %v637 = vsub.f32 1.5, %v636
        %v638 = vmul.f32 %v633, %v637
        %vm639 = vweird.f32 %v590
        %vm640 = vweird.f32 %v633
        %vm641 = vmor %vm639, %vm640
        %v642 = vsel %vm641, %v633, %v638
        %v643 = vrsqrt.pop %v591
        %v644 = vmul.f32 %v643, %v591
        %v645 = vmul.f32 %v644, %v643
        %v646 = vmul.f32 0.5, %v645
        %v647 = vsub.f32 1.5, %v646
        %v648 = vmul.f32 %v643, %v647
        %vm649 = vweird.f32 %v591
        %vm650 = vweird.f32 %v643
        %vm651 = vmor %vm649, %vm650
        %v652 = vsel %vm651, %v643, %v648
        %v653 = vrsqrt.pop %v592
        %v654 = vmul.f32 %v653, %v592
        %v655 = vmul.f32 %v654, %v653
        %v656 = vmul.f32 0.5, %v655
        %v657 = vsub.f32 1.5, %v656
        %v658 = vmul.f32 %v653, %v657
        %vm659 = vweird.f32 %v592
        %vm660 = vweird.f32 %v653
        %vm661 = vmor %vm659, %vm660
        %v662 = vsel %vm661, %v653, %v658
        %v663 = vrsqrt.pop %v593
        %v664 = vmul.f32 %v663, %v593
        %v665 = vmul.f32 %v664, %v663
        %v666 = vmul.f32 0.5, %v665
        %v667 = vsub.f32 1.5, %v666
        %v668 = vmul.f32 %v663, %v667
        %vm669 = vweird.f32 %v593
        %vm670 = vweird.f32 %v663
        %vm671 = vmor %vm669, %vm670
        %v672 = vsel %vm671, %v663, %v668
        %v673 = vrsqrt.pop %v594
        %v674 = vmul.f32 %v673, %v594
        %v675 = vmul.f32 %v674, %v673
        %v676 = vmul.f32 0.5, %v675
        %v677 = vsub.f32 1.5, %v676
        %v678 = vmul.f32 %v673, %v677
        %vm679 = vweird.f32 %v594
        %vm680 = vweird.f32 %v673
        %vm681 = vmor %vm679, %vm680
        %v682 = vsel %vm681, %v673, %v678
        %v683 = vrsqrt.pop %v595
        %v684 = vmul.f32 %v683, %v595
        %v685 = vmul.f32 %v684, %v683
        %v686 = vmul.f32 0.5, %v685
        %v687 = vsub.f32 1.5, %v686
        %v688 = vmul.f32 %v683, %v687
        %vm689 = vweird.f32 %v595
        %vm690 = vweird.f32 %v683
        %vm691 = vmor %vm689, %vm690
        %v692 = vsel %vm691, %v683, %v688
        %v693 = vrsqrt.pop %v596
        %v694 = vmul.f32 %v693, %v596
        %v695 = vmul.f32 %v694, %v693
        %v696 = vmul.f32 0.5, %v695
        %v697 = vsub.f32 1.5, %v696
        %v698 = vmul.f32 %v693, %v697
        %vm699 = vweird.f32 %v596
        %vm700 = vweird.f32 %v693
        %vm701 = vmor %vm699, %vm700
        %v702 = vsel %vm701, %v693, %v698
        %v703 = vrsqrt.pop %v597
        %v704 = vmul.f32 %v703, %v597
        %v705 = vmul.f32 %v704, %v703
        %v706 = vmul.f32 0.5, %v705
        %v707 = vsub.f32 1.5, %v706
        %v708 = vmul.f32 %v703, %v707
        %vm709 = vweird.f32 %v597
        %vm710 = vweird.f32 %v703
        %vm711 = vmor %vm709, %vm710
        %v712 = vsel %vm711, %v703, %v708
        %v713 = vrsqrt.pop %v598
        %v714 = vmul.f32 %v713, %v598
        %v715 = vmul.f32 %v714, %v713
        %v716 = vmul.f32 0.5, %v715
        %v717 = vsub.f32 1.5, %v716
        %v718 = vmul.f32 %v713, %v717
        %vm719 = vweird.f32 %v598
        %vm720 = vweird.f32 %v713
        %vm721 = vmor %vm719, %vm720
        %v722 = vsel %vm721, %v713, %v718
        %v723 = vrsqrt.pop %v599
        %v724 = vmul.f32 %v723, %v599
        %v725 = vmul.f32 %v724, %v723
        %v726 = vmul.f32 0.5, %v725
        %v727 = vsub.f32 1.5, %v726
        %v728 = vmul.f32 %v723, %v727
        %vm729 = vweird.f32 %v599
        %vm730 = vweird.f32 %v723
        %vm731 = vmor %vm729, %vm730
        %v732 = vsel %vm731, %v723, %v728
        %v733 = vrsqrt.pop %v600
        %v734 = vmul.f32 %v733, %v600
        %v735 = vmul.f32 %v734, %v733
        %v736 = vmul.f32 0.5, %v735
        %v737 = vsub.f32 1.5, %v736
        %v738 = vmul.f32 %v733, %v737
        %vm739 = vweird.f32 %v600
        %vm740 = vweird.f32 %v733
        %vm741 = vmor %vm739, %vm740
        %v742 = vsel %vm741, %v733, %v738
        %v743 = vrsqrt.pop %v601
        %v744 = vmul.f32 %v743, %v601
        %v745 = vmul.f32 %v744, %v743
        %v746 = vmul.f32 0.5, %v745
        %v747 = vsub.f32 1.5, %v746
        %v748 = vmul.f32 %v743, %v747
        %vm749 = vweird.f32 %v601
        %vm750 = vweird.f32 %v743
        %vm751 = vmor %vm749, %vm750
        %v752 = vsel %vm751, %v743, %v748
        %v753 = vrsqrt.pop %v602
        %v754 = vmul.f32 %v753, %v602
        %v755 = vmul.f32 %v754, %v753
        %v756 = vmul.f32 0.5, %v755
        %v757 = vsub.f32 1.5, %v756
        %v758 = vmul.f32 %v753, %v757
        %vm759 = vweird.f32 %v602
        %vm760 = vweird.f32 %v753
        %vm761 = vmor %vm759, %vm760
        %v762 = vsel %vm761, %v753, %v758
        %v763 = vmul.f32 %v459, %v612
        %v764 = vmul.f32 %v460, %v612
        %v765 = vmul.f32 %v461, %v622
        %v766 = vmul.f32 %v462, %v622
        %v767 = vmul.f32 %v463, %v632
        %v768 = vmul.f32 %v464, %v632
        %v769 = vmul.f32 %v465, %v642
        %v770 = vmul.f32 %v466, %v642
        %v771 = vmul.f32 %v467, %v652
        %v772 = vmul.f32 %v468, %v652
        %v773 = vmul.f32 %v469, %v662
        %v774 = vmul.f32 %v470, %v662
        %v775 = vmul.f32 %v471, %v672
        %v776 = vmul.f32 %v472, %v672
        %v777 = vmul.f32 %v473, %v682
        %v778 = vmul.f32 %v474, %v682
        %v779 = vmul.f32 %v475, %v692
        %v780 = vmul.f32 %v476, %v692
        %v781 = vmul.f32 %v477, %v702
        %v782 = vmul.f32 %v478, %v702
        %v783 = vmul.f32 %v479, %v712
        %v784 = vmul.f32 %v480, %v712
        %v785 = vmul.f32 %v481, %v722
        %v786 = vmul.f32 %v482, %v722
        %v787 = vmul.f32 %v483, %v732
        %v788 = vmul.f32 %v484, %v732
        %v789 = vmul.f32 %v485, %v742
        %v790 = vmul.f32 %v486, %v742
        %v791 = vmul.f32 %v487, %v752
        %v792 = vmul.f32 %v488, %v752
        %v793 = vmul.f32 %v489, %v762
        %v794 = vmul.f32 %v490, %v762
        %v795 = vadd.f32 %v386, 1.0
        %v796 = vadd.f32 %v387, 1.0
        %v797 = vperm.slane %v795, 1
        %v798 = vperm.slane %v796, 1
        %v799 = vmul.f32 %v763, %v797
        %v800 = vmul.f32 %v764, %v798
        %v801 = vmul.f32 %v765, %v797
        %v802 = vmul.f32 %v766, %v798
        %v803 = vmul.f32 %v767, %v797
        %v804 = vmul.f32 %v768, %v798
        %v805 = vmul.f32 %v769, %v797
        %v806 = vmul.f32 %v770, %v798
        %v807 = vmul.f32 %v771, %v797
        %v808 = vmul.f32 %v772, %v798
        %v809 = vmul.f32 %v773, %v797
        %v810 = vmul.f32 %v774, %v798
        %v811 = vmul.f32 %v775, %v797
        %v812 = vmul.f32 %v776, %v798
        %v813 = vmul.f32 %v777, %v797
        %v814 = vmul.f32 %v778, %v798
        %v815 = vmul.f32 %v779, %v797
        %v816 = vmul.f32 %v780, %v798
        %v817 = vmul.f32 %v781, %v797
        %v818 = vmul.f32 %v782, %v798
        %v819 = vmul.f32 %v783, %v797
        %v820 = vmul.f32 %v784, %v798
        %v821 = vmul.f32 %v785, %v797
        %v822 = vmul.f32 %v786, %v798
        %v823 = vmul.f32 %v787, %v797
        %v824 = vmul.f32 %v788, %v798
        %v825 = vmul.f32 %v789, %v797
        %v826 = vmul.f32 %v790, %v798
        %v827 = vmul.f32 %v791, %v797
        %v828 = vmul.f32 %v792, %v798
        %v829 = vmul.f32 %v793, %v797
        %v830 = vmul.f32 %v794, %v798
        %v831 = vperm.slane %v386, 0
        %v832 = vperm.slane %v387, 0
        %v833 = vadd.f32 %v799, %v831
        %v834 = vadd.f32 %v800, %v832
        %v835 = vadd.f32 %v801, %v831
        %v836 = vadd.f32 %v802, %v832
        %v837 = vadd.f32 %v803, %v831
        %v838 = vadd.f32 %v804, %v832
        %v839 = vadd.f32 %v805, %v831
        %v840 = vadd.f32 %v806, %v832
        %v841 = vadd.f32 %v807, %v831
        %v842 = vadd.f32 %v808, %v832
        %v843 = vadd.f32 %v809, %v831
        %v844 = vadd.f32 %v810, %v832
        %v845 = vadd.f32 %v811, %v831
        %v846 = vadd.f32 %v812, %v832
        %v847 = vadd.f32 %v813, %v831
        %v848 = vadd.f32 %v814, %v832
        %v849 = vadd.f32 %v815, %v831
        %v850 = vadd.f32 %v816, %v832
        %v851 = vadd.f32 %v817, %v831
        %v852 = vadd.f32 %v818, %v832
        %v853 = vadd.f32 %v819, %v831
        %v854 = vadd.f32 %v820, %v832
        %v855 = vadd.f32 %v821, %v831
        %v856 = vadd.f32 %v822, %v832
        %v857 = vadd.f32 %v823, %v831
        %v858 = vadd.f32 %v824, %v832
        %v859 = vadd.f32 %v825, %v831
        %v860 = vadd.f32 %v826, %v832
        %v861 = vadd.f32 %v827, %v831
        %v862 = vadd.f32 %v828, %v832
        %v863 = vadd.f32 %v829, %v831
        %v864 = vadd.f32 %v830, %v832
        %v865 = vpack.c.bf16 %v835, %v833
        %v866 = vpack.c.bf16 %v836, %v834
        %v867 = vpack.c.bf16 %v839, %v837
        %v868 = vpack.c.bf16 %v840, %v838
        %v869 = vpack.c.bf16 %v843, %v841
        %v870 = vpack.c.bf16 %v844, %v842
        %v871 = vpack.c.bf16 %v847, %v845
        %v872 = vpack.c.bf16 %v848, %v846
        %v873 = vpack.c.bf16 %v851, %v849
        %v874 = vpack.c.bf16 %v852, %v850
        %v875 = vpack.c.bf16 %v855, %v853
        %v876 = vpack.c.bf16 %v856, %v854
        %v877 = vpack.c.bf16 %v859, %v857
        %v878 = vpack.c.bf16 %v860, %v858
        %v879 = vpack.c.bf16 %v863, %v861
        %v880 = vpack.c.bf16 %v864, %v862
        %v881 = vld [vmem:[#allocation5] sm:$0xff]
        %v882 = vld [vmem:[#allocation5 + $0x8] sm:$0xff]
        %v883 = vld [vmem:[#allocation5 + $0x10] sm:$0xff]
        %v884 = vld [vmem:[#allocation5 + $0x18] sm:$0xff]
        %v885 = vld [vmem:[#allocation5 + $0x20] sm:$0xff]
        %v886 = vld [vmem:[#allocation5 + $0x28] sm:$0xff]
        %v887 = vld [vmem:[#allocation5 + $0x30] sm:$0xff]
        %v888 = vld [vmem:[#allocation5 + $0x38] sm:$0xff]
        %v889 = vld [vmem:[#allocation5 + $0x40] sm:$0xff]
        %v890 = vld [vmem:[#allocation5 + $0x48] sm:$0xff]
        %v891 = vld [vmem:[#allocation5 + $0x50] sm:$0xff]
        %v892 = vld [vmem:[#allocation5 + $0x58] sm:$0xff]
        %v893 = vld [vmem:[#allocation5 + $0x60] sm:$0xff]
        %v894 = vld [vmem:[#allocation5 + $0x68] sm:$0xff]
        %v895 = vld [vmem:[#allocation5 + $0x70] sm:$0xff]
        %v896 = vld [vmem:[#allocation5 + $0x78] sm:$0xff]
        %v897 = vld [vmem:[#allocation5 + $0x80] sm:$0xff]
        %v898 = vld [vmem:[#allocation5 + $0x88] sm:$0xff]
        %v899 = vld [vmem:[#allocation5 + $0x90] sm:$0xff]
        %v900 = vld [vmem:[#allocation5 + $0x98] sm:$0xff]
        %v901 = vld [vmem:[#allocation5 + $0xa0] sm:$0xff]
        %v902 = vld [vmem:[#allocation5 + $0xa8] sm:$0xff]
        %v903 = vld [vmem:[#allocation5 + $0xb0] sm:$0xff]
        %v904 = vld [vmem:[#allocation5 + $0xb8] sm:$0xff]
        %v905 = vld [vmem:[#allocation5 + $0xc0] sm:$0xff]
        %v906 = vld [vmem:[#allocation5 + $0xc8] sm:$0xff]
        %v907 = vld [vmem:[#allocation5 + $0xd0] sm:$0xff]
        %v908 = vld [vmem:[#allocation5 + $0xd8] sm:$0xff]
        %v909 = vld [vmem:[#allocation5 + $0xe0] sm:$0xff]
        %v910 = vld [vmem:[#allocation5 + $0xe8] sm:$0xff]
        %v911 = vld [vmem:[#allocation5 + $0xf0] sm:$0xff]
        %v912 = vld [vmem:[#allocation5 + $0xf8] sm:$0xff]
        %v913 = vld [vmem:[#allocation5 + $0x100] sm:$0xff]
        %v914 = vld [vmem:[#allocation5 + $0x108] sm:$0xff]
        %v915 = vld [vmem:[#allocation5 + $0x110] sm:$0xff]
        %v916 = vld [vmem:[#allocation5 + $0x118] sm:$0xff]
        %v917 = vld [vmem:[#allocation5 + $0x120] sm:$0xff]
        %v918 = vld [vmem:[#allocation5 + $0x128] sm:$0xff]
        %v919 = vld [vmem:[#allocation5 + $0x130] sm:$0xff]
        %v920 = vld [vmem:[#allocation5 + $0x138] sm:$0xff]
        %v921 = vld [vmem:[#allocation5 + $0x140] sm:$0xff]
        %v922 = vld [vmem:[#allocation5 + $0x148] sm:$0xff]
        %v923 = vld [vmem:[#allocation5 + $0x150] sm:$0xff]
        %v924 = vld [vmem:[#allocation5 + $0x158] sm:$0xff]
        %v925 = vld [vmem:[#allocation5 + $0x160] sm:$0xff]
        %v926 = vld [vmem:[#allocation5 + $0x168] sm:$0xff]
        %v927 = vld [vmem:[#allocation5 + $0x170] sm:$0xff]
        %v928 = vld [vmem:[#allocation5 + $0x178] sm:$0xff]
        %v929 = vld [vmem:[#allocation5 + $0x180] sm:$0xff]
        %v930 = vld [vmem:[#allocation5 + $0x188] sm:$0xff]
        %v931 = vld [vmem:[#allocation5 + $0x190] sm:$0xff]
        %v932 = vld [vmem:[#allocation5 + $0x198] sm:$0xff]
        %v933 = vld [vmem:[#allocation5 + $0x1a0] sm:$0xff]
        %v934 = vld [vmem:[#allocation5 + $0x1a8] sm:$0xff]
        %v935 = vld [vmem:[#allocation5 + $0x1b0] sm:$0xff]
        %v936 = vld [vmem:[#allocation5 + $0x1b8] sm:$0xff]
        %v937 = vld [vmem:[#allocation5 + $0x1c0] sm:$0xff]
        %v938 = vld [vmem:[#allocation5 + $0x1c8] sm:$0xff]
        %v939 = vld [vmem:[#allocation5 + $0x1d0] sm:$0xff]
        %v940 = vld [vmem:[#allocation5 + $0x1d8] sm:$0xff]
        %v941 = vld [vmem:[#allocation5 + $0x1e0] sm:$0xff]
        %v942 = vld [vmem:[#allocation5 + $0x1e8] sm:$0xff]
        %v943 = vld [vmem:[#allocation5 + $0x1f0] sm:$0xff]
        %v944 = vld [vmem:[#allocation5 + $0x1f8] sm:$0xff]
        %v945 = vld [vmem:[#allocation5 + $0x200] sm:$0xff]
        %v946 = vld [vmem:[#allocation5 + $0x208] sm:$0xff]
        %v947 = vld [vmem:[#allocation5 + $0x210] sm:$0xff]
        %v948 = vld [vmem:[#allocation5 + $0x218] sm:$0xff]
        %v949 = vld [vmem:[#allocation5 + $0x220] sm:$0xff]
        %v950 = vld [vmem:[#allocation5 + $0x228] sm:$0xff]
        %v951 = vld [vmem:[#allocation5 + $0x230] sm:$0xff]
        %v952 = vld [vmem:[#allocation5 + $0x238] sm:$0xff]
        %v953 = vld [vmem:[#allocation5 + $0x240] sm:$0xff]
        %v954 = vld [vmem:[#allocation5 + $0x248] sm:$0xff]
        %v955 = vld [vmem:[#allocation5 + $0x250] sm:$0xff]
        %v956 = vld [vmem:[#allocation5 + $0x258] sm:$0xff]
        %v957 = vld [vmem:[#allocation5 + $0x260] sm:$0xff]
        %v958 = vld [vmem:[#allocation5 + $0x268] sm:$0xff]
        %v959 = vld [vmem:[#allocation5 + $0x270] sm:$0xff]
        %v960 = vld [vmem:[#allocation5 + $0x278] sm:$0xff]
        %v961 = vld [vmem:[#allocation5 + $0x280] sm:$0xff]
        %v962 = vld [vmem:[#allocation5 + $0x288] sm:$0xff]
        %v963 = vld [vmem:[#allocation5 + $0x290] sm:$0xff]
        %v964 = vld [vmem:[#allocation5 + $0x298] sm:$0xff]
        %v965 = vld [vmem:[#allocation5 + $0x2a0] sm:$0xff]
        %v966 = vld [vmem:[#allocation5 + $0x2a8] sm:$0xff]
        %v967 = vld [vmem:[#allocation5 + $0x2b0] sm:$0xff]
        %v968 = vld [vmem:[#allocation5 + $0x2b8] sm:$0xff]
        %v969 = vld [vmem:[#allocation5 + $0x2c0] sm:$0xff]
        %v970 = vld [vmem:[#allocation5 + $0x2c8] sm:$0xff]
        %v971 = vld [vmem:[#allocation5 + $0x2d0] sm:$0xff]
        %v972 = vld [vmem:[#allocation5 + $0x2d8] sm:$0xff]
        %v973 = vld [vmem:[#allocation5 + $0x2e0] sm:$0xff]
        %v974 = vld [vmem:[#allocation5 + $0x2e8] sm:$0xff]
        %v975 = vld [vmem:[#allocation5 + $0x2f0] sm:$0xff]
        %v976 = vld [vmem:[#allocation5 + $0x2f8] sm:$0xff]
        %v977 = vld [vmem:[%s3] sm:$0x3f]
        %v979 = vperm.slane %v977, 0
        %v980 = vperm.slane %v977, 1
        %v981 = vperm.slane %v977, 2
        %v982 = vperm.slane %v977, 3
        %v983 = vperm.slane %v977, 4
        %v984 = vperm.slane %v977, 5
        %v1087 = vunpack.c.l.b16 %v881
        %v1088 = vunpack.c.h.b16 %v881
        %v1089 = vunpack.c.l.b16 %v882
        %v1090 = vunpack.c.h.b16 %v882
        %v1091 = vunpack.c.l.b16 %v883
        %v1092 = vunpack.c.h.b16 %v883
        %v1093 = vunpack.c.l.b16 %v884
        %v1094 = vunpack.c.h.b16 %v884
        %v1095 = vunpack.c.l.b16 %v885
        %v1096 = vunpack.c.h.b16 %v885
        %v1097 = vunpack.c.l.b16 %v886
        %v1098 = vunpack.c.h.b16 %v886
        %v1099 = vunpack.c.l.b16 %v887
        %v1100 = vunpack.c.h.b16 %v887
        %v1101 = vunpack.c.l.b16 %v888
        %v1102 = vunpack.c.h.b16 %v888
        %v1103 = vunpack.c.l.b16 %v889
        %v1104 = vunpack.c.h.b16 %v889
        %v1105 = vunpack.c.l.b16 %v890
        %v1106 = vunpack.c.h.b16 %v890
        %v1107 = vunpack.c.l.b16 %v891
        %v1108 = vunpack.c.h.b16 %v891
        %v1109 = vunpack.c.l.b16 %v892
        %v1110 = vunpack.c.h.b16 %v892
        %v1111 = vunpack.c.l.b16 %v893
        %v1112 = vunpack.c.h.b16 %v893
        %v1113 = vunpack.c.l.b16 %v894
        %v1114 = vunpack.c.h.b16 %v894
        %v1115 = vunpack.c.l.b16 %v895
        %v1116 = vunpack.c.h.b16 %v895
        %v1117 = vunpack.c.l.b16 %v896
        %v1118 = vunpack.c.h.b16 %v896
        %v1119 = vunpack.c.l.b16 %v897
        %v1120 = vunpack.c.h.b16 %v897
        %v1121 = vunpack.c.l.b16 %v898
        %v1122 = vunpack.c.h.b16 %v898
        %v1123 = vunpack.c.l.b16 %v899
        %v1124 = vunpack.c.h.b16 %v899
        %v1125 = vunpack.c.l.b16 %v900
        %v1126 = vunpack.c.h.b16 %v900
        %v1127 = vunpack.c.l.b16 %v901
        %v1128 = vunpack.c.h.b16 %v901
        %v1129 = vunpack.c.l.b16 %v902
        %v1130 = vunpack.c.h.b16 %v902
        %v1131 = vunpack.c.l.b16 %v903
        %v1132 = vunpack.c.h.b16 %v903
        %v1133 = vunpack.c.l.b16 %v904
        %v1134 = vunpack.c.h.b16 %v904
        %v1135 = vunpack.c.l.b16 %v905
        %v1136 = vunpack.c.h.b16 %v905
        %v1137 = vunpack.c.l.b16 %v906
        %v1138 = vunpack.c.h.b16 %v906
        %v1139 = vunpack.c.l.b16 %v907
        %v1140 = vunpack.c.h.b16 %v907
        %v1141 = vunpack.c.l.b16 %v908
        %v1142 = vunpack.c.h.b16 %v908
        %v1143 = vunpack.c.l.b16 %v909
        %v1144 = vunpack.c.h.b16 %v909
        %v1145 = vunpack.c.l.b16 %v910
        %v1146 = vunpack.c.h.b16 %v910
        %v1147 = vunpack.c.l.b16 %v911
        %v1148 = vunpack.c.h.b16 %v911
        %v1149 = vunpack.c.l.b16 %v912
        %v1150 = vunpack.c.h.b16 %v912
        %v1151 = vunpack.c.l.b16 %v913
        %v1152 = vunpack.c.h.b16 %v913
        %v1153 = vunpack.c.l.b16 %v914
        %v1154 = vunpack.c.h.b16 %v914
        %v1155 = vunpack.c.l.b16 %v915
        %v1156 = vunpack.c.h.b16 %v915
        %v1157 = vunpack.c.l.b16 %v916
        %v1158 = vunpack.c.h.b16 %v916
        %v1159 = vunpack.c.l.b16 %v917
        %v1160 = vunpack.c.h.b16 %v917
        %v1161 = vunpack.c.l.b16 %v918
        %v1162 = vunpack.c.h.b16 %v918
        %v1163 = vunpack.c.l.b16 %v919
        %v1164 = vunpack.c.h.b16 %v919
        %v1165 = vunpack.c.l.b16 %v920
        %v1166 = vunpack.c.h.b16 %v920
        %v1167 = vunpack.c.l.b16 %v921
        %v1168 = vunpack.c.h.b16 %v921
        %v1169 = vunpack.c.l.b16 %v922
        %v1170 = vunpack.c.h.b16 %v922
        %v1171 = vunpack.c.l.b16 %v923
        %v1172 = vunpack.c.h.b16 %v923
        %v1173 = vunpack.c.l.b16 %v924
        %v1174 = vunpack.c.h.b16 %v924
        %v1175 = vunpack.c.l.b16 %v925
        %v1176 = vunpack.c.h.b16 %v925
        %v1177 = vunpack.c.l.b16 %v926
        %v1178 = vunpack.c.h.b16 %v926
        %v1179 = vunpack.c.l.b16 %v927
        %v1180 = vunpack.c.h.b16 %v927
        %v1181 = vunpack.c.l.b16 %v928
        %v1182 = vunpack.c.h.b16 %v928
        %v1183 = vunpack.c.l.b16 %v929
        %v1184 = vunpack.c.h.b16 %v929
        %v1185 = vunpack.c.l.b16 %v930
        %v1186 = vunpack.c.h.b16 %v930
        %v1187 = vunpack.c.l.b16 %v931
        %v1188 = vunpack.c.h.b16 %v931
        %v1189 = vunpack.c.l.b16 %v932
        %v1190 = vunpack.c.h.b16 %v932
        %v1191 = vunpack.c.l.b16 %v933
        %v1192 = vunpack.c.h.b16 %v933
        %v1193 = vunpack.c.l.b16 %v934
        %v1194 = vunpack.c.h.b16 %v934
        %v1195 = vunpack.c.l.b16 %v935
        %v1196 = vunpack.c.h.b16 %v935
        %v1197 = vunpack.c.l.b16 %v936
        %v1198 = vunpack.c.h.b16 %v936
        %v1199 = vunpack.c.l.b16 %v937
        %v1200 = vunpack.c.h.b16 %v937
        %v1201 = vunpack.c.l.b16 %v938
        %v1202 = vunpack.c.h.b16 %v938
        %v1203 = vunpack.c.l.b16 %v939
        %v1204 = vunpack.c.h.b16 %v939
        %v1205 = vunpack.c.l.b16 %v940
        %v1206 = vunpack.c.h.b16 %v940
        %v1207 = vunpack.c.l.b16 %v941
        %v1208 = vunpack.c.h.b16 %v941
        %v1209 = vunpack.c.l.b16 %v942
        %v1210 = vunpack.c.h.b16 %v942
        %v1211 = vunpack.c.l.b16 %v943
        %v1212 = vunpack.c.h.b16 %v943
        %v1213 = vunpack.c.l.b16 %v944
        %v1214 = vunpack.c.h.b16 %v944
        %v1215 = vunpack.c.l.b16 %v945
        %v1216 = vunpack.c.h.b16 %v945
        %v1217 = vunpack.c.l.b16 %v946
        %v1218 = vunpack.c.h.b16 %v946
        %v1219 = vunpack.c.l.b16 %v947
        %v1220 = vunpack.c.h.b16 %v947
        %v1221 = vunpack.c.l.b16 %v948
        %v1222 = vunpack.c.h.b16 %v948
        %v1223 = vunpack.c.l.b16 %v949
        %v1224 = vunpack.c.h.b16 %v949
        %v1225 = vunpack.c.l.b16 %v950
        %v1226 = vunpack.c.h.b16 %v950
        %v1227 = vunpack.c.l.b16 %v951
        %v1228 = vunpack.c.h.b16 %v951
        %v1229 = vunpack.c.l.b16 %v952
        %v1230 = vunpack.c.h.b16 %v952
        %v1231 = vunpack.c.l.b16 %v953
        %v1232 = vunpack.c.h.b16 %v953
        %v1233 = vunpack.c.l.b16 %v954
        %v1234 = vunpack.c.h.b16 %v954
        %v1235 = vunpack.c.l.b16 %v955
        %v1236 = vunpack.c.h.b16 %v955
        %v1237 = vunpack.c.l.b16 %v956
        %v1238 = vunpack.c.h.b16 %v956
        %v1239 = vunpack.c.l.b16 %v957
        %v1240 = vunpack.c.h.b16 %v957
        %v1241 = vunpack.c.l.b16 %v958
        %v1242 = vunpack.c.h.b16 %v958
        %v1243 = vunpack.c.l.b16 %v959
        %v1244 = vunpack.c.h.b16 %v959
        %v1245 = vunpack.c.l.b16 %v960
        %v1246 = vunpack.c.h.b16 %v960
        %v1247 = vunpack.c.l.b16 %v961
        %v1248 = vunpack.c.h.b16 %v961
        %v1249 = vunpack.c.l.b16 %v962
        %v1250 = vunpack.c.h.b16 %v962
        %v1251 = vunpack.c.l.b16 %v963
        %v1252 = vunpack.c.h.b16 %v963
        %v1253 = vunpack.c.l.b16 %v964
        %v1254 = vunpack.c.h.b16 %v964
        %v1255 = vunpack.c.l.b16 %v965
        %v1256 = vunpack.c.h.b16 %v965
        %v1257 = vunpack.c.l.b16 %v966
        %v1258 = vunpack.c.h.b16 %v966
        %v1259 = vunpack.c.l.b16 %v967
        %v1260 = vunpack.c.h.b16 %v967
        %v1261 = vunpack.c.l.b16 %v968
        %v1262 = vunpack.c.h.b16 %v968
        %v1263 = vunpack.c.l.b16 %v969
        %v1264 = vunpack.c.h.b16 %v969
        %v1265 = vunpack.c.l.b16 %v970
        %v1266 = vunpack.c.h.b16 %v970
        %v1267 = vunpack.c.l.b16 %v971
        %v1268 = vunpack.c.h.b16 %v971
        %v1269 = vunpack.c.l.b16 %v972
        %v1270 = vunpack.c.h.b16 %v972
        %v1271 = vunpack.c.l.b16 %v973
        %v1272 = vunpack.c.h.b16 %v973
        %v1273 = vunpack.c.l.b16 %v974
        %v1274 = vunpack.c.h.b16 %v974
        %v1275 = vunpack.c.l.b16 %v975
        %v1276 = vunpack.c.h.b16 %v975
        %v1277 = vunpack.c.l.b16 %v976
        %v1278 = vunpack.c.h.b16 %v976
        %v1279 = vpack.c.b16 %v1093, %v1087
        %v1280 = vpack.c.b16 %v1094, %v1088
        %v1281 = vpack.c.b16 %v1095, %v1089
        %v1282 = vpack.c.b16 %v1096, %v1090
        %v1283 = vpack.c.b16 %v1097, %v1091
        %v1284 = vpack.c.b16 %v1098, %v1092
        %v1285 = vpack.c.b16 %v1105, %v1099
        %v1286 = vpack.c.b16 %v1106, %v1100
        %v1287 = vpack.c.b16 %v1107, %v1101
        %v1288 = vpack.c.b16 %v1108, %v1102
        %v1289 = vpack.c.b16 %v1109, %v1103
        %v1290 = vpack.c.b16 %v1110, %v1104
        %v1291 = vpack.c.b16 %v1117, %v1111
        %v1292 = vpack.c.b16 %v1118, %v1112
        %v1293 = vpack.c.b16 %v1119, %v1113
        %v1294 = vpack.c.b16 %v1120, %v1114
        %v1295 = vpack.c.b16 %v1121, %v1115
        %v1296 = vpack.c.b16 %v1122, %v1116
        %v1297 = vpack.c.b16 %v1129, %v1123
        %v1298 = vpack.c.b16 %v1130, %v1124
        %v1299 = vpack.c.b16 %v1131, %v1125
        %v1300 = vpack.c.b16 %v1132, %v1126
        %v1301 = vpack.c.b16 %v1133, %v1127
        %v1302 = vpack.c.b16 %v1134, %v1128
        %v1303 = vpack.c.b16 %v1141, %v1135
        %v1304 = vpack.c.b16 %v1142, %v1136
        %v1305 = vpack.c.b16 %v1143, %v1137
        %v1306 = vpack.c.b16 %v1144, %v1138
        %v1307 = vpack.c.b16 %v1145, %v1139
        %v1308 = vpack.c.b16 %v1146, %v1140
        %v1309 = vpack.c.b16 %v1153, %v1147
        %v1310 = vpack.c.b16 %v1154, %v1148
        %v1311 = vpack.c.b16 %v1155, %v1149
        %v1312 = vpack.c.b16 %v1156, %v1150
        %v1313 = vpack.c.b16 %v1157, %v1151
        %v1314 = vpack.c.b16 %v1158, %v1152
        %v1315 = vpack.c.b16 %v1165, %v1159
        %v1316 = vpack.c.b16 %v1166, %v1160
        %v1317 = vpack.c.b16 %v1167, %v1161
        %v1318 = vpack.c.b16 %v1168, %v1162
        %v1319 = vpack.c.b16 %v1169, %v1163
        %v1320 = vpack.c.b16 %v1170, %v1164
        %v1321 = vpack.c.b16 %v1177, %v1171
        %v1322 = vpack.c.b16 %v1178, %v1172
        %v1323 = vpack.c.b16 %v1179, %v1173
        %v1324 = vpack.c.b16 %v1180, %v1174
        %v1325 = vpack.c.b16 %v1181, %v1175
        %v1326 = vpack.c.b16 %v1182, %v1176
        %v1327 = vpack.c.b16 %v1189, %v1183
        %v1328 = vpack.c.b16 %v1190, %v1184
        %v1329 = vpack.c.b16 %v1191, %v1185
        %v1330 = vpack.c.b16 %v1192, %v1186
        %v1331 = vpack.c.b16 %v1193, %v1187
        %v1332 = vpack.c.b16 %v1194, %v1188
        %v1333 = vpack.c.b16 %v1201, %v1195
        %v1334 = vpack.c.b16 %v1202, %v1196
        %v1335 = vpack.c.b16 %v1203, %v1197
        %v1336 = vpack.c.b16 %v1204, %v1198
        %v1337 = vpack.c.b16 %v1205, %v1199
        %v1338 = vpack.c.b16 %v1206, %v1200
        %v1339 = vpack.c.b16 %v1213, %v1207
        %v1340 = vpack.c.b16 %v1214, %v1208
        %v1341 = vpack.c.b16 %v1215, %v1209
        %v1342 = vpack.c.b16 %v1216, %v1210
        %v1343 = vpack.c.b16 %v1217, %v1211
        %v1344 = vpack.c.b16 %v1218, %v1212
        %v1345 = vpack.c.b16 %v1225, %v1219
        %v1346 = vpack.c.b16 %v1226, %v1220
        %v1347 = vpack.c.b16 %v1227, %v1221
        %v1348 = vpack.c.b16 %v1228, %v1222
        %v1349 = vpack.c.b16 %v1229, %v1223
        %v1350 = vpack.c.b16 %v1230, %v1224
        %v1351 = vpack.c.b16 %v1237, %v1231
        %v1352 = vpack.c.b16 %v1238, %v1232
        %v1353 = vpack.c.b16 %v1239, %v1233
        %v1354 = vpack.c.b16 %v1240, %v1234
        %v1355 = vpack.c.b16 %v1241, %v1235
        %v1356 = vpack.c.b16 %v1242, %v1236
        %v1357 = vpack.c.b16 %v1249, %v1243
        %v1358 = vpack.c.b16 %v1250, %v1244
        %v1359 = vpack.c.b16 %v1251, %v1245
        %v1360 = vpack.c.b16 %v1252, %v1246
        %v1361 = vpack.c.b16 %v1253, %v1247
        %v1362 = vpack.c.b16 %v1254, %v1248
        %v1363 = vpack.c.b16 %v1261, %v1255
        %v1364 = vpack.c.b16 %v1262, %v1256
        %v1365 = vpack.c.b16 %v1263, %v1257
        %v1366 = vpack.c.b16 %v1264, %v1258
        %v1367 = vpack.c.b16 %v1265, %v1259
        %v1368 = vpack.c.b16 %v1266, %v1260
        %v1369 = vpack.c.b16 %v1273, %v1267
        %v1370 = vpack.c.b16 %v1274, %v1268
        %v1371 = vpack.c.b16 %v1275, %v1269
        %v1372 = vpack.c.b16 %v1276, %v1270
        %v1373 = vpack.c.b16 %v1277, %v1271
        %v1374 = vpack.c.b16 %v1278, %v1272
        %1471 = vmatpush.bf16.msra.mxu0 %v1321
        %1472 = vmatpush.bf16.msra.mxu0 %v1315
        %1473 = vmatpush.bf16.msra.mxu0 %v1309
        %1474 = vmatpush.bf16.msra.mxu0 %v1303
        %1475 = vmatpush.bf16.msra.mxu0 %v1297
        %1476 = vmatpush.bf16.msra.mxu0 %v1291
        %1477 = vmatpush.bf16.msra.mxu0 %v1285
        %1478 = vmatpush.bf16.msra.mxu0 %v1279
        %1479 = vmatmul.bf16.gmra.mxu0 %v865
        %v1480 = vpop.f32.mrf.mxu0
        %v1481 = vadd.f32 %v979, %v1480
        %v1482 = vpop.f32.mrf.mxu0
        %v1483 = vadd.f32 %v979, %v1482
        %1484 = vmatmul.bf16.gmra.mxu0 %v867
        %v1485 = vpop.f32.mrf.mxu0
        %v1486 = vadd.f32 %v979, %v1485
        %v1487 = vpop.f32.mrf.mxu0
        %v1488 = vadd.f32 %v979, %v1487
        %1489 = vmatmul.bf16.gmra.mxu0 %v869
        %v1490 = vpop.f32.mrf.mxu0
        %v1491 = vadd.f32 %v979, %v1490
        %v1492 = vpop.f32.mrf.mxu0
        %v1493 = vadd.f32 %v979, %v1492
        %1494 = vmatmul.bf16.gmra.mxu0 %v871
        %v1495 = vpop.f32.mrf.mxu0
        %v1496 = vadd.f32 %v979, %v1495
        %v1497 = vpop.f32.mrf.mxu0
        %v1498 = vadd.f32 %v979, %v1497
        %1499 = vmatmul.bf16.gmra.mxu0 %v873
        %v1500 = vpop.f32.mrf.mxu0
        %v1501 = vadd.f32 %v979, %v1500
        %v1502 = vpop.f32.mrf.mxu0
        %v1503 = vadd.f32 %v979, %v1502
        %1504 = vmatmul.bf16.gmra.mxu0 %v875
        %v1505 = vpop.f32.mrf.mxu0
        %v1506 = vadd.f32 %v979, %v1505
        %v1507 = vpop.f32.mrf.mxu0
        %v1508 = vadd.f32 %v979, %v1507
        %1509 = vmatmul.bf16.gmra.mxu0 %v877
        %v1510 = vpop.f32.mrf.mxu0
        %v1511 = vadd.f32 %v979, %v1510
        %v1512 = vpop.f32.mrf.mxu0
        %v1513 = vadd.f32 %v979, %v1512
        %1514 = vmatmul.bf16.gmra.mxu0 %v879
        %v1515 = vpop.f32.mrf.mxu0
        %v1516 = vadd.f32 %v979, %v1515
        %v1517 = vpop.f32.mrf.mxu0
        %v1518 = vadd.f32 %v979, %v1517
        %1519 = vdwg.mxu0
        %1520 = vmatpush.bf16.msra.mxu0 %v1369
        %1521 = vmatpush.bf16.msra.mxu0 %v1363
        %1522 = vmatpush.bf16.msra.mxu0 %v1357
        %1523 = vmatpush.bf16.msra.mxu0 %v1351
        %1524 = vmatpush.bf16.msra.mxu0 %v1345
        %1525 = vmatpush.bf16.msra.mxu0 %v1339
        %1526 = vmatpush.bf16.msra.mxu0 %v1333
        %1527 = vmatpush.bf16.msra.mxu0 %v1327
        %1528 = vmatmul.bf16.gmra.mxu0 %v866
        %v1529 = vpop.f32.mrf.mxu0
        %v1530 = vadd.f32 %v1481, %v1529
        %v1531 = vpop.f32.mrf.mxu0
        %v1532 = vadd.f32 %v1483, %v1531
        %1533 = vmatmul.bf16.gmra.mxu0 %v868
        %v1534 = vpop.f32.mrf.mxu0
        %v1535 = vadd.f32 %v1486, %v1534
        %v1536 = vpop.f32.mrf.mxu0
        %v1537 = vadd.f32 %v1488, %v1536
        %1538 = vmatmul.bf16.gmra.mxu0 %v870
        %v1539 = vpop.f32.mrf.mxu0
        %v1540 = vadd.f32 %v1491, %v1539
        %v1541 = vpop.f32.mrf.mxu0
        %v1542 = vadd.f32 %v1493, %v1541
        %1543 = vmatmul.bf16.gmra.mxu0 %v872
        %v1544 = vpop.f32.mrf.mxu0
        %v1545 = vadd.f32 %v1496, %v1544
        %v1546 = vpop.f32.mrf.mxu0
        %v1547 = vadd.f32 %v1498, %v1546
        %1548 = vmatmul.bf16.gmra.mxu0 %v874
        %v1549 = vpop.f32.mrf.mxu0
        %v1550 = vadd.f32 %v1501, %v1549
        %v1551 = vpop.f32.mrf.mxu0
        %v1552 = vadd.f32 %v1503, %v1551
        %1553 = vmatmul.bf16.gmra.mxu0 %v876
        %v1554 = vpop.f32.mrf.mxu0
        %v1555 = vadd.f32 %v1506, %v1554
        %v1556 = vpop.f32.mrf.mxu0
        %v1557 = vadd.f32 %v1508, %v1556
        %1558 = vmatmul.bf16.gmra.mxu0 %v878
        %v1559 = vpop.f32.mrf.mxu0
        %v1560 = vadd.f32 %v1511, %v1559
        %v1561 = vpop.f32.mrf.mxu0
        %v1562 = vadd.f32 %v1513, %v1561
        %1563 = vmatmul.bf16.gmra.mxu0 %v880
        %v1564 = vpop.f32.mrf.mxu0
        %v1565 = vadd.f32 %v1516, %v1564
        %v1566 = vpop.f32.mrf.mxu0
        %v1567 = vadd.f32 %v1518, %v1566
        %1568 = vdwg.mxu0
        %1569 = vmatpush.bf16.msra.mxu0 %v1322
        %1570 = vmatpush.bf16.msra.mxu0 %v1316
        %1571 = vmatpush.bf16.msra.mxu0 %v1310
        %1572 = vmatpush.bf16.msra.mxu0 %v1304
        %1573 = vmatpush.bf16.msra.mxu0 %v1298
        %1574 = vmatpush.bf16.msra.mxu0 %v1292
        %1575 = vmatpush.bf16.msra.mxu0 %v1286
        %1576 = vmatpush.bf16.msra.mxu0 %v1280
        %1577 = vmatmul.bf16.gmra.mxu0 %v865
        %v1578 = vpop.f32.mrf.mxu0
        %v1579 = vadd.f32 %v980, %v1578
        %v1580 = vpop.f32.mrf.mxu0
        %v1581 = vadd.f32 %v980, %v1580
        %1582 = vmatmul.bf16.gmra.mxu0 %v867
        %v1583 = vpop.f32.mrf.mxu0
        %v1584 = vadd.f32 %v980, %v1583
        %v1585 = vpop.f32.mrf.mxu0
        %v1586 = vadd.f32 %v980, %v1585
        %1587 = vmatmul.bf16.gmra.mxu0 %v869
        %v1588 = vpop.f32.mrf.mxu0
        %v1589 = vadd.f32 %v980, %v1588
        %v1590 = vpop.f32.mrf.mxu0
        %v1591 = vadd.f32 %v980, %v1590
        %1592 = vmatmul.bf16.gmra.mxu0 %v871
        %v1593 = vpop.f32.mrf.mxu0
        %v1594 = vadd.f32 %v980, %v1593
        %v1595 = vpop.f32.mrf.mxu0
        %v1596 = vadd.f32 %v980, %v1595
        %1597 = vmatmul.bf16.gmra.mxu0 %v873
        %v1598 = vpop.f32.mrf.mxu0
        %v1599 = vadd.f32 %v980, %v1598
        %v1600 = vpop.f32.mrf.mxu0
        %v1601 = vadd.f32 %v980, %v1600
        %1602 = vmatmul.bf16.gmra.mxu0 %v875
        %v1603 = vpop.f32.mrf.mxu0
        %v1604 = vadd.f32 %v980, %v1603
        %v1605 = vpop.f32.mrf.mxu0
        %v1606 = vadd.f32 %v980, %v1605
        %1607 = vmatmul.bf16.gmra.mxu0 %v877
        %v1608 = vpop.f32.mrf.mxu0
        %v1609 = vadd.f32 %v980, %v1608
        %v1610 = vpop.f32.mrf.mxu0
        %v1611 = vadd.f32 %v980, %v1610
        %1612 = vmatmul.bf16.gmra.mxu0 %v879
        %v1613 = vpop.f32.mrf.mxu0
        %v1614 = vadd.f32 %v980, %v1613
        %v1615 = vpop.f32.mrf.mxu0
        %v1616 = vadd.f32 %v980, %v1615
        %1617 = vdwg.mxu0
        %1618 = vmatpush.bf16.msra.mxu0 %v1370
        %1619 = vmatpush.bf16.msra.mxu0 %v1364
        %1620 = vmatpush.bf16.msra.mxu0 %v1358
        %1621 = vmatpush.bf16.msra.mxu0 %v1352
        %1622 = vmatpush.bf16.msra.mxu0 %v1346
        %1623 = vmatpush.bf16.msra.mxu0 %v1340
        %1624 = vmatpush.bf16.msra.mxu0 %v1334
        %1625 = vmatpush.bf16.msra.mxu0 %v1328
        %1626 = vmatmul.bf16.gmra.mxu0 %v866
        %v1627 = vpop.f32.mrf.mxu0
        %v1628 = vadd.f32 %v1579, %v1627
        %v1629 = vpop.f32.mrf.mxu0
        %v1630 = vadd.f32 %v1581, %v1629
        %1631 = vmatmul.bf16.gmra.mxu0 %v868
        %v1632 = vpop.f32.mrf.mxu0
        %v1633 = vadd.f32 %v1584, %v1632
        %v1634 = vpop.f32.mrf.mxu0
        %v1635 = vadd.f32 %v1586, %v1634
        %1636 = vmatmul.bf16.gmra.mxu0 %v870
        %v1637 = vpop.f32.mrf.mxu0
        %v1638 = vadd.f32 %v1589, %v1637
        %v1639 = vpop.f32.mrf.mxu0
        %v1640 = vadd.f32 %v1591, %v1639
        %1641 = vmatmul.bf16.gmra.mxu0 %v872
        %v1642 = vpop.f32.mrf.mxu0
        %v1643 = vadd.f32 %v1594, %v1642
        %v1644 = vpop.f32.mrf.mxu0
        %v1645 = vadd.f32 %v1596, %v1644
        %1646 = vmatmul.bf16.gmra.mxu0 %v874
        %v1647 = vpop.f32.mrf.mxu0
        %v1648 = vadd.f32 %v1599, %v1647
        %v1649 = vpop.f32.mrf.mxu0
        %v1650 = vadd.f32 %v1601, %v1649
        %1651 = vmatmul.bf16.gmra.mxu0 %v876
        %v1652 = vpop.f32.mrf.mxu0
        %v1653 = vadd.f32 %v1604, %v1652
        %v1654 = vpop.f32.mrf.mxu0
        %v1655 = vadd.f32 %v1606, %v1654
        %1656 = vmatmul.bf16.gmra.mxu0 %v878
        %v1657 = vpop.f32.mrf.mxu0
        %v1658 = vadd.f32 %v1609, %v1657
        %v1659 = vpop.f32.mrf.mxu0
        %v1660 = vadd.f32 %v1611, %v1659
        %1661 = vmatmul.bf16.gmra.mxu0 %v880
        %v1662 = vpop.f32.mrf.mxu0
        %v1663 = vadd.f32 %v1614, %v1662
        %v1664 = vpop.f32.mrf.mxu0
        %v1665 = vadd.f32 %v1616, %v1664
        %1666 = vdwg.mxu0
        %1667 = vmatpush.bf16.msra.mxu0 %v1323
        %1668 = vmatpush.bf16.msra.mxu0 %v1317
        %1669 = vmatpush.bf16.msra.mxu0 %v1311
        %1670 = vmatpush.bf16.msra.mxu0 %v1305
        %1671 = vmatpush.bf16.msra.mxu0 %v1299
        %1672 = vmatpush.bf16.msra.mxu0 %v1293
        %1673 = vmatpush.bf16.msra.mxu0 %v1287
        %1674 = vmatpush.bf16.msra.mxu0 %v1281
        %1675 = vmatmul.bf16.gmra.mxu0 %v865
        %v1676 = vpop.f32.mrf.mxu0
        %v1677 = vadd.f32 %v981, %v1676
        %v1678 = vpop.f32.mrf.mxu0
        %v1679 = vadd.f32 %v981, %v1678
        %1680 = vmatmul.bf16.gmra.mxu0 %v867
        %v1681 = vpop.f32.mrf.mxu0
        %v1682 = vadd.f32 %v981, %v1681
        %v1683 = vpop.f32.mrf.mxu0
        %v1684 = vadd.f32 %v981, %v1683
        %1685 = vmatmul.bf16.gmra.mxu0 %v869
        %v1686 = vpop.f32.mrf.mxu0
        %v1687 = vadd.f32 %v981, %v1686
        %v1688 = vpop.f32.mrf.mxu0
        %v1689 = vadd.f32 %v981, %v1688
        %1690 = vmatmul.bf16.gmra.mxu0 %v871
        %v1691 = vpop.f32.mrf.mxu0
        %v1692 = vadd.f32 %v981, %v1691
        %v1693 = vpop.f32.mrf.mxu0
        %v1694 = vadd.f32 %v981, %v1693
        %1695 = vmatmul.bf16.gmra.mxu0 %v873
        %v1696 = vpop.f32.mrf.mxu0
        %v1697 = vadd.f32 %v981, %v1696
        %v1698 = vpop.f32.mrf.mxu0
        %v1699 = vadd.f32 %v981, %v1698
        %1700 = vmatmul.bf16.gmra.mxu0 %v875
        %v1701 = vpop.f32.mrf.mxu0
        %v1702 = vadd.f32 %v981, %v1701
        %v1703 = vpop.f32.mrf.mxu0
        %v1704 = vadd.f32 %v981, %v1703
        %1705 = vmatmul.bf16.gmra.mxu0 %v877
        %v1706 = vpop.f32.mrf.mxu0
        %v1707 = vadd.f32 %v981, %v1706
        %v1708 = vpop.f32.mrf.mxu0
        %v1709 = vadd.f32 %v981, %v1708
        %1710 = vmatmul.bf16.gmra.mxu0 %v879
        %v1711 = vpop.f32.mrf.mxu0
        %v1712 = vadd.f32 %v981, %v1711
        %v1713 = vpop.f32.mrf.mxu0
        %v1714 = vadd.f32 %v981, %v1713
        %1715 = vdwg.mxu0
        %1716 = vmatpush.bf16.msra.mxu0 %v1371
        %1717 = vmatpush.bf16.msra.mxu0 %v1365
        %1718 = vmatpush.bf16.msra.mxu0 %v1359
        %1719 = vmatpush.bf16.msra.mxu0 %v1353
        %1720 = vmatpush.bf16.msra.mxu0 %v1347
        %1721 = vmatpush.bf16.msra.mxu0 %v1341
        %1722 = vmatpush.bf16.msra.mxu0 %v1335
        %1723 = vmatpush.bf16.msra.mxu0 %v1329
        %1724 = vmatmul.bf16.gmra.mxu0 %v866
        %v1725 = vpop.f32.mrf.mxu0
        %v1726 = vadd.f32 %v1677, %v1725
        %v1727 = vpop.f32.mrf.mxu0
        %v1728 = vadd.f32 %v1679, %v1727
        %1729 = vmatmul.bf16.gmra.mxu0 %v868
        %v1730 = vpop.f32.mrf.mxu0
        %v1731 = vadd.f32 %v1682, %v1730
        %v1732 = vpop.f32.mrf.mxu0
        %v1733 = vadd.f32 %v1684, %v1732
        %1734 = vmatmul.bf16.gmra.mxu0 %v870
        %v1735 = vpop.f32.mrf.mxu0
        %v1736 = vadd.f32 %v1687, %v1735
        %v1737 = vpop.f32.mrf.mxu0
        %v1738 = vadd.f32 %v1689, %v1737
        %1739 = vmatmul.bf16.gmra.mxu0 %v872
        %v1740 = vpop.f32.mrf.mxu0
        %v1741 = vadd.f32 %v1692, %v1740
        %v1742 = vpop.f32.mrf.mxu0
        %v1743 = vadd.f32 %v1694, %v1742
        %1744 = vmatmul.bf16.gmra.mxu0 %v874
        %v1745 = vpop.f32.mrf.mxu0
        %v1746 = vadd.f32 %v1697, %v1745
        %v1747 = vpop.f32.mrf.mxu0
        %v1748 = vadd.f32 %v1699, %v1747
        %1749 = vmatmul.bf16.gmra.mxu0 %v876
        %v1750 = vpop.f32.mrf.mxu0
        %v1751 = vadd.f32 %v1702, %v1750
        %v1752 = vpop.f32.mrf.mxu0
        %v1753 = vadd.f32 %v1704, %v1752
        %1754 = vmatmul.bf16.gmra.mxu0 %v878
        %v1755 = vpop.f32.mrf.mxu0
        %v1756 = vadd.f32 %v1707, %v1755
        %v1757 = vpop.f32.mrf.mxu0
        %v1758 = vadd.f32 %v1709, %v1757
        %1759 = vmatmul.bf16.gmra.mxu0 %v880
        %v1760 = vpop.f32.mrf.mxu0
        %v1761 = vadd.f32 %v1712, %v1760
        %v1762 = vpop.f32.mrf.mxu0
        %v1763 = vadd.f32 %v1714, %v1762
        %1764 = vdwg.mxu0
        %1765 = vmatpush.bf16.msra.mxu0 %v1324
        %1766 = vmatpush.bf16.msra.mxu0 %v1318
        %1767 = vmatpush.bf16.msra.mxu0 %v1312
        %1768 = vmatpush.bf16.msra.mxu0 %v1306
        %1769 = vmatpush.bf16.msra.mxu0 %v1300
        %1770 = vmatpush.bf16.msra.mxu0 %v1294
        %1771 = vmatpush.bf16.msra.mxu0 %v1288
        %1772 = vmatpush.bf16.msra.mxu0 %v1282
        %1773 = vmatmul.bf16.gmra.mxu0 %v865
        %v1774 = vpop.f32.mrf.mxu0
        %v1775 = vadd.f32 %v982, %v1774
        %v1776 = vpop.f32.mrf.mxu0
        %v1777 = vadd.f32 %v982, %v1776
        %1778 = vmatmul.bf16.gmra.mxu0 %v867
        %v1779 = vpop.f32.mrf.mxu0
        %v1780 = vadd.f32 %v982, %v1779
        %v1781 = vpop.f32.mrf.mxu0
        %v1782 = vadd.f32 %v982, %v1781
        %1783 = vmatmul.bf16.gmra.mxu0 %v869
        %v1784 = vpop.f32.mrf.mxu0
        %v1785 = vadd.f32 %v982, %v1784
        %v1786 = vpop.f32.mrf.mxu0
        %v1787 = vadd.f32 %v982, %v1786
        %1788 = vmatmul.bf16.gmra.mxu0 %v871
        %v1789 = vpop.f32.mrf.mxu0
        %v1790 = vadd.f32 %v982, %v1789
        %v1791 = vpop.f32.mrf.mxu0
        %v1792 = vadd.f32 %v982, %v1791
        %1793 = vmatmul.bf16.gmra.mxu0 %v873
        %v1794 = vpop.f32.mrf.mxu0
        %v1795 = vadd.f32 %v982, %v1794
        %v1796 = vpop.f32.mrf.mxu0
        %v1797 = vadd.f32 %v982, %v1796
        %1798 = vmatmul.bf16.gmra.mxu0 %v875
        %v1799 = vpop.f32.mrf.mxu0
        %v1800 = vadd.f32 %v982, %v1799
        %v1801 = vpop.f32.mrf.mxu0
        %v1802 = vadd.f32 %v982, %v1801
        %1803 = vmatmul.bf16.gmra.mxu0 %v877
        %v1804 = vpop.f32.mrf.mxu0
        %v1805 = vadd.f32 %v982, %v1804
        %v1806 = vpop.f32.mrf.mxu0
        %v1807 = vadd.f32 %v982, %v1806
        %1808 = vmatmul.bf16.gmra.mxu0 %v879
        %v1809 = vpop.f32.mrf.mxu0
        %v1810 = vadd.f32 %v982, %v1809
        %v1811 = vpop.f32.mrf.mxu0
        %v1812 = vadd.f32 %v982, %v1811
        %1813 = vdwg.mxu0
        %1814 = vmatpush.bf16.msra.mxu0 %v1372
        %1815 = vmatpush.bf16.msra.mxu0 %v1366
        %1816 = vmatpush.bf16.msra.mxu0 %v1360
        %1817 = vmatpush.bf16.msra.mxu0 %v1354
        %1818 = vmatpush.bf16.msra.mxu0 %v1348
        %1819 = vmatpush.bf16.msra.mxu0 %v1342
        %1820 = vmatpush.bf16.msra.mxu0 %v1336
        %1821 = vmatpush.bf16.msra.mxu0 %v1330
        %1822 = vmatmul.bf16.gmra.mxu0 %v866
        %v1823 = vpop.f32.mrf.mxu0
        %v1824 = vadd.f32 %v1775, %v1823
        %v1825 = vpop.f32.mrf.mxu0
        %v1826 = vadd.f32 %v1777, %v1825
        %1827 = vmatmul.bf16.gmra.mxu0 %v868
        %v1828 = vpop.f32.mrf.mxu0
        %v1829 = vadd.f32 %v1780, %v1828
        %v1830 = vpop.f32.mrf.mxu0
        %v1831 = vadd.f32 %v1782, %v1830
        %1832 = vmatmul.bf16.gmra.mxu0 %v870
        %v1833 = vpop.f32.mrf.mxu0
        %v1834 = vadd.f32 %v1785, %v1833
        %v1835 = vpop.f32.mrf.mxu0
        %v1836 = vadd.f32 %v1787, %v1835
        %1837 = vmatmul.bf16.gmra.mxu0 %v872
        %v1838 = vpop.f32.mrf.mxu0
        %v1839 = vadd.f32 %v1790, %v1838
        %v1840 = vpop.f32.mrf.mxu0
        %v1841 = vadd.f32 %v1792, %v1840
        %1842 = vmatmul.bf16.gmra.mxu0 %v874
        %v1843 = vpop.f32.mrf.mxu0
        %v1844 = vadd.f32 %v1795, %v1843
        %v1845 = vpop.f32.mrf.mxu0
        %v1846 = vadd.f32 %v1797, %v1845
        %1847 = vmatmul.bf16.gmra.mxu0 %v876
        %v1848 = vpop.f32.mrf.mxu0
        %v1849 = vadd.f32 %v1800, %v1848
        %v1850 = vpop.f32.mrf.mxu0
        %v1851 = vadd.f32 %v1802, %v1850
        %1852 = vmatmul.bf16.gmra.mxu0 %v878
        %v1853 = vpop.f32.mrf.mxu0
        %v1854 = vadd.f32 %v1805, %v1853
        %v1855 = vpop.f32.mrf.mxu0
        %v1856 = vadd.f32 %v1807, %v1855
        %1857 = vmatmul.bf16.gmra.mxu0 %v880
        %v1858 = vpop.f32.mrf.mxu0
        %v1859 = vadd.f32 %v1810, %v1858
        %v1860 = vpop.f32.mrf.mxu0
        %v1861 = vadd.f32 %v1812, %v1860
        %1862 = vdwg.mxu0
        %1863 = vmatpush.bf16.msra.mxu0 %v1325
        %1864 = vmatpush.bf16.msra.mxu0 %v1319
        %1865 = vmatpush.bf16.msra.mxu0 %v1313
        %1866 = vmatpush.bf16.msra.mxu0 %v1307
        %1867 = vmatpush.bf16.msra.mxu0 %v1301
        %1868 = vmatpush.bf16.msra.mxu0 %v1295
        %1869 = vmatpush.bf16.msra.mxu0 %v1289
        %1870 = vmatpush.bf16.msra.mxu0 %v1283
        %1871 = vmatmul.bf16.gmra.mxu0 %v865
        %v1872 = vpop.f32.mrf.mxu0
        %v1873 = vadd.f32 %v983, %v1872
        %v1874 = vpop.f32.mrf.mxu0
        %v1875 = vadd.f32 %v983, %v1874
        %1876 = vmatmul.bf16.gmra.mxu0 %v867
        %v1877 = vpop.f32.mrf.mxu0
        %v1878 = vadd.f32 %v983, %v1877
        %v1879 = vpop.f32.mrf.mxu0
        %v1880 = vadd.f32 %v983, %v1879
        %1881 = vmatmul.bf16.gmra.mxu0 %v869
        %v1882 = vpop.f32.mrf.mxu0
        %v1883 = vadd.f32 %v983, %v1882
        %v1884 = vpop.f32.mrf.mxu0
        %v1885 = vadd.f32 %v983, %v1884
        %1886 = vmatmul.bf16.gmra.mxu0 %v871
        %v1887 = vpop.f32.mrf.mxu0
        %v1888 = vadd.f32 %v983, %v1887
        %v1889 = vpop.f32.mrf.mxu0
        %v1890 = vadd.f32 %v983, %v1889
        %1891 = vmatmul.bf16.gmra.mxu0 %v873
        %v1892 = vpop.f32.mrf.mxu0
        %v1893 = vadd.f32 %v983, %v1892
        %v1894 = vpop.f32.mrf.mxu0
        %v1895 = vadd.f32 %v983, %v1894
        %1896 = vmatmul.bf16.gmra.mxu0 %v875
        %v1897 = vpop.f32.mrf.mxu0
        %v1898 = vadd.f32 %v983, %v1897
        %v1899 = vpop.f32.mrf.mxu0
        %v1900 = vadd.f32 %v983, %v1899
        %1901 = vmatmul.bf16.gmra.mxu0 %v877
        %v1902 = vpop.f32.mrf.mxu0
        %v1903 = vadd.f32 %v983, %v1902
        %v1904 = vpop.f32.mrf.mxu0
        %v1905 = vadd.f32 %v983, %v1904
        %1906 = vmatmul.bf16.gmra.mxu0 %v879
        %v1907 = vpop.f32.mrf.mxu0
        %v1908 = vadd.f32 %v983, %v1907
        %v1909 = vpop.f32.mrf.mxu0
        %v1910 = vadd.f32 %v983, %v1909
        %1911 = vdwg.mxu0
        %1912 = vmatpush.bf16.msra.mxu0 %v1373
        %1913 = vmatpush.bf16.msra.mxu0 %v1367
        %1914 = vmatpush.bf16.msra.mxu0 %v1361
        %1915 = vmatpush.bf16.msra.mxu0 %v1355
        %1916 = vmatpush.bf16.msra.mxu0 %v1349
        %1917 = vmatpush.bf16.msra.mxu0 %v1343
        %1918 = vmatpush.bf16.msra.mxu0 %v1337
        %1919 = vmatpush.bf16.msra.mxu0 %v1331
        %1920 = vmatmul.bf16.gmra.mxu0 %v866
        %v1921 = vpop.f32.mrf.mxu0
        %v1922 = vadd.f32 %v1873, %v1921
        %v1923 = vpop.f32.mrf.mxu0
        %v1924 = vadd.f32 %v1875, %v1923
        %1925 = vmatmul.bf16.gmra.mxu0 %v868
        %v1926 = vpop.f32.mrf.mxu0
        %v1927 = vadd.f32 %v1878, %v1926
        %v1928 = vpop.f32.mrf.mxu0
        %v1929 = vadd.f32 %v1880, %v1928
        %1930 = vmatmul.bf16.gmra.mxu0 %v870
        %v1931 = vpop.f32.mrf.mxu0
        %v1932 = vadd.f32 %v1883, %v1931
        %v1933 = vpop.f32.mrf.mxu0
        %v1934 = vadd.f32 %v1885, %v1933
        %1935 = vmatmul.bf16.gmra.mxu0 %v872
        %v1936 = vpop.f32.mrf.mxu0
        %v1937 = vadd.f32 %v1888, %v1936
        %v1938 = vpop.f32.mrf.mxu0
        %v1939 = vadd.f32 %v1890, %v1938
        %1940 = vmatmul.bf16.gmra.mxu0 %v874
        %v1941 = vpop.f32.mrf.mxu0
        %v1942 = vadd.f32 %v1893, %v1941
        %v1943 = vpop.f32.mrf.mxu0
        %v1944 = vadd.f32 %v1895, %v1943
        %1945 = vmatmul.bf16.gmra.mxu0 %v876
        %v1946 = vpop.f32.mrf.mxu0
        %v1947 = vadd.f32 %v1898, %v1946
        %v1948 = vpop.f32.mrf.mxu0
        %v1949 = vadd.f32 %v1900, %v1948
        %1950 = vmatmul.bf16.gmra.mxu0 %v878
        %v1951 = vpop.f32.mrf.mxu0
        %v1952 = vadd.f32 %v1903, %v1951
        %v1953 = vpop.f32.mrf.mxu0
        %v1954 = vadd.f32 %v1905, %v1953
        %1955 = vmatmul.bf16.gmra.mxu0 %v880
        %v1956 = vpop.f32.mrf.mxu0
        %v1957 = vadd.f32 %v1908, %v1956
        %v1958 = vpop.f32.mrf.mxu0
        %v1959 = vadd.f32 %v1910, %v1958
        %1960 = vdwg.mxu0
        %1961 = vmatpush.bf16.msra.mxu0 %v1326
        %1962 = vmatpush.bf16.msra.mxu0 %v1320
        %1963 = vmatpush.bf16.msra.mxu0 %v1314
        %1964 = vmatpush.bf16.msra.mxu0 %v1308
        %1965 = vmatpush.bf16.msra.mxu0 %v1302
        %1966 = vmatpush.bf16.msra.mxu0 %v1296
        %1967 = vmatpush.bf16.msra.mxu0 %v1290
        %1968 = vmatpush.bf16.msra.mxu0 %v1284
        %1969 = vmatmul.bf16.gmra.mxu0 %v865
        %v1970 = vpop.f32.mrf.mxu0
        %v1971 = vadd.f32 %v984, %v1970
        %v1972 = vpop.f32.mrf.mxu0
        %v1973 = vadd.f32 %v984, %v1972
        %1974 = vmatmul.bf16.gmra.mxu0 %v867
        %v1975 = vpop.f32.mrf.mxu0
        %v1976 = vadd.f32 %v984, %v1975
        %v1977 = vpop.f32.mrf.mxu0
        %v1978 = vadd.f32 %v984, %v1977
        %1979 = vmatmul.bf16.gmra.mxu0 %v869
        %v1980 = vpop.f32.mrf.mxu0
        %v1981 = vadd.f32 %v984, %v1980
        %v1982 = vpop.f32.mrf.mxu0
        %v1983 = vadd.f32 %v984, %v1982
        %1984 = vmatmul.bf16.gmra.mxu0 %v871
        %v1985 = vpop.f32.mrf.mxu0
        %v1986 = vadd.f32 %v984, %v1985
        %v1987 = vpop.f32.mrf.mxu0
        %v1988 = vadd.f32 %v984, %v1987
        %1989 = vmatmul.bf16.gmra.mxu0 %v873
        %v1990 = vpop.f32.mrf.mxu0
        %v1991 = vadd.f32 %v984, %v1990
        %v1992 = vpop.f32.mrf.mxu0
        %v1993 = vadd.f32 %v984, %v1992
        %1994 = vmatmul.bf16.gmra.mxu0 %v875
        %v1995 = vpop.f32.mrf.mxu0
        %v1996 = vadd.f32 %v984, %v1995
        %v1997 = vpop.f32.mrf.mxu0
        %v1998 = vadd.f32 %v984, %v1997
        %1999 = vmatmul.bf16.gmra.mxu0 %v877
        %v2000 = vpop.f32.mrf.mxu0
        %v2001 = vadd.f32 %v984, %v2000
        %v2002 = vpop.f32.mrf.mxu0
        %v2003 = vadd.f32 %v984, %v2002
        %2004 = vmatmul.bf16.gmra.mxu0 %v879
        %v2005 = vpop.f32.mrf.mxu0
        %v2006 = vadd.f32 %v984, %v2005
        %v2007 = vpop.f32.mrf.mxu0
        %v2008 = vadd.f32 %v984, %v2007
        %2009 = vdwg.mxu0
        %2010 = vmatpush.bf16.msra.mxu0 %v1374
        %2011 = vmatpush.bf16.msra.mxu0 %v1368
        %2012 = vmatpush.bf16.msra.mxu0 %v1362
        %2013 = vmatpush.bf16.msra.mxu0 %v1356
        %2014 = vmatpush.bf16.msra.mxu0 %v1350
        %2015 = vmatpush.bf16.msra.mxu0 %v1344
        %2016 = vmatpush.bf16.msra.mxu0 %v1338
        %2017 = vmatpush.bf16.msra.mxu0 %v1332
        %2018 = vmatmul.bf16.gmra.mxu0 %v866
        %v2019 = vpop.f32.mrf.mxu0
        %v2020 = vadd.f32 %v1971, %v2019
        %v2021 = vpop.f32.mrf.mxu0
        %v2022 = vadd.f32 %v1973, %v2021
        %2023 = vmatmul.bf16.gmra.mxu0 %v868
        %v2024 = vpop.f32.mrf.mxu0
        %v2025 = vadd.f32 %v1976, %v2024
        %v2026 = vpop.f32.mrf.mxu0
        %v2027 = vadd.f32 %v1978, %v2026
        %2028 = vmatmul.bf16.gmra.mxu0 %v870
        %v2029 = vpop.f32.mrf.mxu0
        %v2030 = vadd.f32 %v1981, %v2029
        %v2031 = vpop.f32.mrf.mxu0
        %v2032 = vadd.f32 %v1983, %v2031
        %2033 = vmatmul.bf16.gmra.mxu0 %v872
        %v2034 = vpop.f32.mrf.mxu0
        %v2035 = vadd.f32 %v1986, %v2034
        %v2036 = vpop.f32.mrf.mxu0
        %v2037 = vadd.f32 %v1988, %v2036
        %2038 = vmatmul.bf16.gmra.mxu0 %v874
        %v2039 = vpop.f32.mrf.mxu0
        %v2040 = vadd.f32 %v1991, %v2039
        %v2041 = vpop.f32.mrf.mxu0
        %v2042 = vadd.f32 %v1993, %v2041
        %2043 = vmatmul.bf16.gmra.mxu0 %v876
        %v2044 = vpop.f32.mrf.mxu0
        %v2045 = vadd.f32 %v1996, %v2044
        %v2046 = vpop.f32.mrf.mxu0
        %v2047 = vadd.f32 %v1998, %v2046
        %2048 = vmatmul.bf16.gmra.mxu0 %v878
        %v2049 = vpop.f32.mrf.mxu0
        %v2050 = vadd.f32 %v2001, %v2049
        %v2051 = vpop.f32.mrf.mxu0
        %v2052 = vadd.f32 %v2003, %v2051
        %2053 = vmatmul.bf16.gmra.mxu0 %v880
        %v2054 = vpop.f32.mrf.mxu0
        %v2055 = vadd.f32 %v2006, %v2054
        %v2056 = vpop.f32.mrf.mxu0
        %v2057 = vadd.f32 %v2008, %v2056
        %2058 = vdwg.mxu0
        %v2059 = vmul.f32 %v1530, 0.25
        %v2060 = vmul.f32 %v1628, 0.25
        %v2061 = vmul.f32 %v1532, 0.25
        %v2062 = vmul.f32 %v1630, 0.25
        %v2063 = vmul.f32 %v1535, 0.25
        %v2064 = vmul.f32 %v1633, 0.25
        %v2065 = vmul.f32 %v1537, 0.25
        %v2066 = vmul.f32 %v1635, 0.25
        %v2067 = vmul.f32 %v1540, 0.25
        %v2068 = vmul.f32 %v1638, 0.25
        %v2069 = vmul.f32 %v1542, 0.25
        %v2070 = vmul.f32 %v1640, 0.25
        %v2071 = vmul.f32 %v1545, 0.25
        %v2072 = vmul.f32 %v1643, 0.25
        %v2073 = vmul.f32 %v1547, 0.25
        %v2074 = vmul.f32 %v1645, 0.25
        %v2075 = vmul.f32 %v1550, 0.25
        %v2076 = vmul.f32 %v1648, 0.25
        %v2077 = vmul.f32 %v1552, 0.25
        %v2078 = vmul.f32 %v1650, 0.25
        %v2079 = vmul.f32 %v1555, 0.25
        %v2080 = vmul.f32 %v1653, 0.25
        %v2081 = vmul.f32 %v1557, 0.25
        %v2082 = vmul.f32 %v1655, 0.25
        %v2083 = vmul.f32 %v1560, 0.25
        %v2084 = vmul.f32 %v1658, 0.25
        %v2085 = vmul.f32 %v1562, 0.25
        %v2086 = vmul.f32 %v1660, 0.25
        %v2087 = vmul.f32 %v1565, 0.25
        %v2088 = vmul.f32 %v1663, 0.25
        %v2089 = vmul.f32 %v1567, 0.25
        %v2090 = vmul.f32 %v1665, 0.25
        %v2091 = vpack.c.bf16 %v2060, %v2059
        %v2092 = vpack.c.bf16 %v2062, %v2061
        %v2093 = vpack.c.bf16 %v2064, %v2063
        %v2094 = vpack.c.bf16 %v2066, %v2065
        %v2095 = vpack.c.bf16 %v2068, %v2067
        %v2096 = vpack.c.bf16 %v2070, %v2069
        %v2097 = vpack.c.bf16 %v2072, %v2071
        %v2098 = vpack.c.bf16 %v2074, %v2073
        %v2099 = vpack.c.bf16 %v2076, %v2075
        %v2100 = vpack.c.bf16 %v2078, %v2077
        %v2101 = vpack.c.bf16 %v2080, %v2079
        %v2102 = vpack.c.bf16 %v2082, %v2081
        %v2103 = vpack.c.bf16 %v2084, %v2083
        %v2104 = vpack.c.bf16 %v2086, %v2085
        %v2105 = vpack.c.bf16 %v2088, %v2087
        %v2106 = vpack.c.bf16 %v2090, %v2089
        %2107 = vst [vmem:[%s330] sm:$0xff] %v2091
        %2108 = vst [vmem:[%s330 + $0x8] sm:$0xff] %v2092
        %2109 = vst [vmem:[%s330 + $0x10] sm:$0xff] %v2093
        %2110 = vst [vmem:[%s330 + $0x18] sm:$0xff] %v2094
        %2111 = vst [vmem:[%s330 + $0x20] sm:$0xff] %v2095
        %2112 = vst [vmem:[%s330 + $0x28] sm:$0xff] %v2096
        %2113 = vst [vmem:[%s330 + $0x30] sm:$0xff] %v2097
        %2114 = vst [vmem:[%s330 + $0x38] sm:$0xff] %v2098
        %2115 = vst [vmem:[%s330 + $0x40] sm:$0xff] %v2099
        %2116 = vst [vmem:[%s330 + $0x48] sm:$0xff] %v2100
        %2117 = vst [vmem:[%s330 + $0x50] sm:$0xff] %v2101
        %2118 = vst [vmem:[%s330 + $0x58] sm:$0xff] %v2102
        %2119 = vst [vmem:[%s330 + $0x60] sm:$0xff] %v2103
        %2120 = vst [vmem:[%s330 + $0x68] sm:$0xff] %v2104
        %2121 = vst [vmem:[%s330 + $0x70] sm:$0xff] %v2105
        %2122 = vst [vmem:[%s330 + $0x78] sm:$0xff] %v2106
        %v2123 = vpack.c.bf16 %v1824, %v1726
        %v2124 = vpack.c.bf16 %v1826, %v1728
        %v2125 = vpack.c.bf16 %v1829, %v1731
        %v2126 = vpack.c.bf16 %v1831, %v1733
        %v2127 = vpack.c.bf16 %v1834, %v1736
        %v2128 = vpack.c.bf16 %v1836, %v1738
        %v2129 = vpack.c.bf16 %v1839, %v1741
        %v2130 = vpack.c.bf16 %v1841, %v1743
        %v2131 = vpack.c.bf16 %v1844, %v1746
        %v2132 = vpack.c.bf16 %v1846, %v1748
        %v2133 = vpack.c.bf16 %v1849, %v1751
        %v2134 = vpack.c.bf16 %v1851, %v1753
        %v2135 = vpack.c.bf16 %v1854, %v1756
        %v2136 = vpack.c.bf16 %v1856, %v1758
        %v2137 = vpack.c.bf16 %v1859, %v1761
        %v2138 = vpack.c.bf16 %v1861, %v1763
        %2139 = vst [vmem:[%s337] sm:$0xff] %v2123
        %2140 = vst [vmem:[%s337 + $0x8] sm:$0xff] %v2124
        %2141 = vst [vmem:[%s337 + $0x10] sm:$0xff] %v2125
        %2142 = vst [vmem:[%s337 + $0x18] sm:$0xff] %v2126
        %2143 = vst [vmem:[%s337 + $0x20] sm:$0xff] %v2127
        %2144 = vst [vmem:[%s337 + $0x28] sm:$0xff] %v2128
        %2145 = vst [vmem:[%s337 + $0x30] sm:$0xff] %v2129
        %2146 = vst [vmem:[%s337 + $0x38] sm:$0xff] %v2130
        %2147 = vst [vmem:[%s337 + $0x40] sm:$0xff] %v2131
        %2148 = vst [vmem:[%s337 + $0x48] sm:$0xff] %v2132
        %2149 = vst [vmem:[%s337 + $0x50] sm:$0xff] %v2133
        %2150 = vst [vmem:[%s337 + $0x58] sm:$0xff] %v2134
        %2151 = vst [vmem:[%s337 + $0x60] sm:$0xff] %v2135
        %2152 = vst [vmem:[%s337 + $0x68] sm:$0xff] %v2136
        %2153 = vst [vmem:[%s337 + $0x70] sm:$0xff] %v2137
        %2154 = vst [vmem:[%s337 + $0x78] sm:$0xff] %v2138
        %v2155 = vpack.c.bf16 %v2020, %v1922
        %v2156 = vpack.c.bf16 %v2022, %v1924
        %v2157 = vpack.c.bf16 %v2025, %v1927
        %v2158 = vpack.c.bf16 %v2027, %v1929
        %v2159 = vpack.c.bf16 %v2030, %v1932
        %v2160 = vpack.c.bf16 %v2032, %v1934
        %v2161 = vpack.c.bf16 %v2035, %v1937
        %v2162 = vpack.c.bf16 %v2037, %v1939
        %v2163 = vpack.c.bf16 %v2040, %v1942
        %v2164 = vpack.c.bf16 %v2042, %v1944
        %v2165 = vpack.c.bf16 %v2045, %v1947
        %v2166 = vpack.c.bf16 %v2047, %v1949
        %v2167 = vpack.c.bf16 %v2050, %v1952
        %v2168 = vpack.c.bf16 %v2052, %v1954
        %v2169 = vpack.c.bf16 %v2055, %v1957
        %v2170 = vpack.c.bf16 %v2057, %v1959
        %2171 = vst [vmem:[%s344] sm:$0xff] %v2155
        %2172 = vst [vmem:[%s344 + $0x8] sm:$0xff] %v2156
        %2173 = vst [vmem:[%s344 + $0x10] sm:$0xff] %v2157
        %2174 = vst [vmem:[%s344 + $0x18] sm:$0xff] %v2158
        %2175 = vst [vmem:[%s344 + $0x20] sm:$0xff] %v2159
        %2176 = vst [vmem:[%s344 + $0x28] sm:$0xff] %v2160
        %2177 = vst [vmem:[%s344 + $0x30] sm:$0xff] %v2161
        %2178 = vst [vmem:[%s344 + $0x38] sm:$0xff] %v2162
        %2179 = vst [vmem:[%s344 + $0x40] sm:$0xff] %v2163
        %2180 = vst [vmem:[%s344 + $0x48] sm:$0xff] %v2164
        %2181 = vst [vmem:[%s344 + $0x50] sm:$0xff] %v2165
        %2182 = vst [vmem:[%s344 + $0x58] sm:$0xff] %v2166
        %2183 = vst [vmem:[%s344 + $0x60] sm:$0xff] %v2167
        %2184 = vst [vmem:[%s344 + $0x68] sm:$0xff] %v2168
        %2185 = vst [vmem:[%s344 + $0x70] sm:$0xff] %v2169
        %2186 = vst [vmem:[%s344 + $0x78] sm:$0xff] %v2170
        %s2187 = sand.u32 %s146, 1
        %s2188 = scalar_lea.sflag [#allocation4], %s2187
        %s2189 = sand.u32 %s146, 1
        %s2190 = smul.addr %s2189, 128
        %s2191 = scalar_lea.vmem [#allocation7], %s2190
        %s2192 = sand.u32 %s28, 1
        %s2193 = scalar_lea.sflag [#allocation9], %s2192
        %s2194 = sand.u32 %s174, 1
        %s2195 = smul.addr %s2194, 128
        %s2196 = scalar_lea.vmem [#allocation8], %s2195
        %s2197 = sand.u32 %s28, 1
        %s2198 = scalar_lea.sflag [#allocation9], %s2197
        %s2199 = sand.u32 %s202, 1
        %s2200 = smul.addr %s2199, 128
        %s2201 = scalar_lea.vmem [#allocation10], %s2200
        // Predicated region
        $region45: #{tpu_custom_call.1} parent=35 // pred_check
          %p2202 = pneg %p156
        $region46: #{tpu_custom_call.1} parent=35 // pred_check_branch
          %2204 = sbr.rel (%p2202) target = $region48
        $region47: #{tpu_custom_call.1} parent=35 // pred_region
          %s2205 = smul.u32 16, %s33
          %2207 = vsyncadd %s2188, 0
          %s2208 = smul.addr %s2205, 2
          %s2209 = smul.addr %s32, 64
          %s2210 = sadd.s32 %s2208, %s2209
          %s2211 = smul.addr %s2210, 4
          %s2212 = scalar_lea.hbm %s4, %s2211
          %s2213 = sshll.u32 %s2191, 4
          %s2214 = int_to_ptr.vmem [resolvable:$true] %s2213
          %s2215 = sshll.u32 %s2212, 4
          %s2216 = int_to_ptr.hbm [resolvable:$true] %s2215
          %2221 = dma.vmem_to_hbm [thread:$0]  %s2214, 2048, %s2216, %s2188, 128, 128, 8
        $region48: #{tpu_custom_call.1} parent=35 // pred_fallthru
          _
        // Predicated region
        $region49: #{tpu_custom_call.1} parent=35 // pred_check
          %p2222 = pneg %p184
        $region50: #{tpu_custom_call.1} parent=35 // pred_check_branch
          %2224 = sbr.rel (%p2222) target = $region52
        $region51: #{tpu_custom_call.1} parent=35 // pred_region
          %s2225 = smul.u32 16, %s33
          %2227 = vsyncadd %s2193, 0
          %s2228 = smul.addr %s2225, 2
          %s2229 = smul.addr %s32, 64
          %s2230 = sadd.s32 %s2228, %s2229
          %s2231 = smul.addr %s2230, 4
          %s2232 = scalar_lea.hbm %s5, %s2231
          %s2233 = sshll.u32 %s2196, 4
          %s2234 = int_to_ptr.vmem [resolvable:$true] %s2233
          %s2235 = sshll.u32 %s2232, 4
          %s2236 = int_to_ptr.hbm [resolvable:$true] %s2235
          %2241 = dma.vmem_to_hbm [thread:$0]  %s2234, 2048, %s2236, %s2193, 128, 128, 8
        $region52: #{tpu_custom_call.1} parent=35 // pred_fallthru
          _
        // Predicated region
        $region53: #{tpu_custom_call.1} parent=35 // pred_check
          %p2242 = pneg %p212
        $region54: #{tpu_custom_call.1} parent=35 // pred_check_branch
          %2244 = sbr.rel (%p2242) target = $region56
        $region55: #{tpu_custom_call.1} parent=35 // pred_region
          %s2245 = smul.u32 16, %s33
          %2247 = vsyncadd %s2198, 0
          %s2248 = smul.addr %s2245, 2
          %s2249 = smul.addr %s32, 64
          %s2250 = sadd.s32 %s2248, %s2249
          %s2251 = smul.addr %s2250, 4
          %s2252 = scalar_lea.hbm %s6, %s2251
          %s2253 = sshll.u32 %s2201, 4
          %s2254 = int_to_ptr.vmem [resolvable:$true] %s2253
          %s2255 = sshll.u32 %s2252, 4
          %s2256 = int_to_ptr.hbm [resolvable:$true] %s2255
          %2261 = dma.vmem_to_hbm [thread:$0]  %s2254, 2048, %s2256, %s2198, 128, 128, 8
        $region56: #{tpu_custom_call.1} parent=35 // pred_fallthru
          _
      $region36: #{tpu_custom_call.1} parent=5 // pred_fallthru
        _
      %p2262 = scmp.le.s32.totalorder 2, %s23
      // Predicated region
      $region57: #{tpu_custom_call.1} parent=5 // pred_check
        %p2263 = pneg %p2262
      $region58: #{tpu_custom_call.1} parent=5 // pred_check_branch
        %2265 = sbr.rel (%p2263) target = $region60
      $region59: #{tpu_custom_call.1} parent=5 // pred_region
        %s2266 = ssub.s32 %s23, 2
        // Predicated region
        $region61: #{tpu_custom_call.1} parent=59 // pred_check
          %p2267 = pneg %p162
        $region62: #{tpu_custom_call.1} parent=59 // pred_check_branch
          %2269 = sbr.rel (%p2267) target = $region64
        $region63: #{tpu_custom_call.1} parent=59 // pred_region
          %s2270 = sand.u32 %s147, 1
          %s2271 = scalar_lea.sflag [#allocation4], %s2270
          %s2272 = sand.u32 %s147, 1
          %s2273 = smul.addr %s2272, 128
          %s2274 = scalar_lea.vmem [#allocation7], %s2273
          %2276 = dma.done %s2271, 2048
        $region64: #{tpu_custom_call.1} parent=59 // pred_fallthru
          _
        // Predicated region
        $region65: #{tpu_custom_call.1} parent=59 // pred_check
          %p2277 = pneg %p190
        $region66: #{tpu_custom_call.1} parent=59 // pred_check_branch
          %2279 = sbr.rel (%p2277) target = $region68
        $region67: #{tpu_custom_call.1} parent=59 // pred_region
          %s2280 = sand.u32 %s29, 1
          %s2281 = scalar_lea.sflag [#allocation9], %s2280
          %s2282 = sand.u32 %s175, 1
          %s2283 = smul.addr %s2282, 128
          %s2284 = scalar_lea.vmem [#allocation8], %s2283
          %2286 = dma.done %s2281, 2048
        $region68: #{tpu_custom_call.1} parent=59 // pred_fallthru
          _
        // Predicated region
        $region69: #{tpu_custom_call.1} parent=59 // pred_check
          %p2287 = pneg %p218
        $region70: #{tpu_custom_call.1} parent=59 // pred_check_branch
          %2289 = sbr.rel (%p2287) target = $region72
        $region71: #{tpu_custom_call.1} parent=59 // pred_region
          %s2290 = sand.u32 %s29, 1
          %s2291 = scalar_lea.sflag [#allocation9], %s2290
          %s2292 = sand.u32 %s203, 1
          %s2293 = smul.addr %s2292, 128
          %s2294 = scalar_lea.vmem [#allocation10], %s2293
          %2296 = dma.done %s2291, 2048
        $region72: #{tpu_custom_call.1} parent=59 // pred_fallthru
          _
      $region60: #{tpu_custom_call.1} parent=5 // pred_fallthru
        _
    $region6: #{tpu_custom_call.1} parent=1 // loop_footer
      %s27 = sadd.s32 1, %s23
    $region7: #{tpu_custom_call.1} parent=1 // loop_footer_branch
      %22 = sbr.rel target = $region3
    $region8: #{tpu_custom_call.1} parent=1 // loop_exit
      _
    %2297 = vsyncpa [#allocation3], 1
    %s2298 = scalar_lea.sflag [#allocation3], 1
    %2299 = vsyncpa %s2298, 1
    %2300 = vsyncpa [#allocation6], 1
    %2301 = vsyncpa [#allocation4], 1
    %s2302 = scalar_lea.sflag [#allocation4], 1
    %2303 = vsyncpa %s2302, 1
    %2304 = vsyncpa [#allocation9], 1
    %s2305 = scalar_lea.sflag [#allocation9], 1
    %2306 = vsyncpa %s2305, 1

</llo_original>
